<compile_context>
chip_gen: v7x
topology: tpu7x:2x2x1
jax: 0.10.0
libtpu: 0.0.40
codegen_flags: <defaults>
</compile_context>

<pallas_src>
import functools

import jax
import jax.numpy as jnp
from jax import lax
from jax.experimental import pallas as pl
from jax.experimental.pallas import tpu as pltpu

KSIZE = 7
PAD = KSIZE // 2  # 3


def _spatial_attention_kernel(x_ref, mh_ref, mw_ref, w_ref, o_ref,
                              sum_ref, max_ref, *, C, H, W, HW):
    """x_ref: (TB, TC, HW) VMEM; mh_ref/mw_ref: (7, HWp) int32 VMEM;
    w_ref: (2*7*7,) f32 SMEM; o_ref: (TB, 1, HWp) VMEM;
    sum_ref/max_ref: (TB, SLAB, HWp) f32 VMEM scratch persisting across C."""
    kc = pl.program_id(1)
    TB, TC, _ = x_ref.shape
    _, SLAB, HWp = sum_ref.shape

    @pl.when(kc == 0)
    def _init():
        sum_ref[...] = jnp.zeros(sum_ref.shape, sum_ref.dtype)
        max_ref[...] = jnp.full(max_ref.shape, -jnp.inf, max_ref.dtype)

    # Streamed channel reduction: one vreg-deep slab at a time (no full-tile
    # f32 temp); accumulate per sublane row, defer the cross-sublane fold.
    nfull, rem = divmod(TC, SLAB)
    if nfull > 0:
        def _slab(s, carry):
            c0 = pl.multiple_of(s * SLAB, SLAB)
            xs = x_ref[:, pl.ds(c0, SLAB), :].astype(jnp.float32)   # (TB,SLAB,HW)
            sum_ref[:, :, :HW] = sum_ref[:, :, :HW] + xs
            max_ref[:, :, :HW] = jnp.maximum(max_ref[:, :, :HW], xs)
            return carry
        lax.fori_loop(0, nfull, _slab, 0, unroll=min(nfull, 8))
    if rem > 0:
        xs = x_ref[:, pl.ds(nfull * SLAB, rem), :].astype(jnp.float32)
        sum_ref[:, :rem, :HW] = sum_ref[:, :rem, :HW] + xs
        max_ref[:, :rem, :HW] = jnp.maximum(max_ref[:, :rem, :HW], xs)

    @pl.when(kc == pl.num_programs(1) - 1)
    def _finalize():
        avg = jnp.sum(sum_ref[...], axis=1) * (1.0 / C)      # (TB, HWp) f32
        mx = jnp.max(max_ref[...], axis=1)                   # (TB, HWp) f32

        # dy-rolled, row-masked bases; masks loaded just-in-time (one row each).
        bases = []
        for dy in range(KSIZE):
            sy = ((PAD - dy) * W) % HWp
            mh = mh_ref[dy:dy + 1, :] != 0                   # (1, HWp)
            ba = avg if sy == 0 else pltpu.roll(avg, sy, 1)
            bm = mx if sy == 0 else pltpu.roll(mx, sy, 1)
            bases.append((jnp.where(mh, ba, 0.0), jnp.where(mh, bm, 0.0)))

        # Linearity of roll: weighted sum over (ci, dy) first, then one small
        # lane roll and one column mask per dx.
        acc = jnp.zeros((TB, HWp), jnp.float32)
        for dx in range(KSIZE):
            part = jnp.zeros((TB, HWp), jnp.float32)
            for dy in range(KSIZE):
                ba, bm = bases[dy]
                part = part + ba * w_ref[dy * KSIZE + dx]
                part = part + bm * w_ref[KSIZE * KSIZE + dy * KSIZE + dx]
            sx = (PAD - dx) % HWp
            if sx != 0:
                part = pltpu.roll(part, sx, 1)
            mw = mw_ref[dx:dx + 1, :] != 0                   # (1, HWp)
            acc = acc + jnp.where(mw, part, 0.0)

        o_ref[...] = jax.nn.sigmoid(acc)[:, None, :].astype(o_ref.dtype)


def _pick_batch_block(N, cap):
    """Largest divisor of N <= cap, preferring >=2 batch blocks (v7x megacore)."""
    divs = [d for d in range(1, min(N, cap) + 1) if N % d == 0]
    multi = [d for d in divs if N // d >= 2]
    return max(multi) if multi else max(divs)


def _pick_c_block(C, max_tc, cmul):
    """Channel tile: whole C if it fits, else the largest divisor of C that is
    a multiple of `cmul` (sublane alignment) and fits the byte budget."""
    if C <= max_tc:
        return C
    best = 0
    for d in range(cmul, min(max_tc, C) + 1, cmul):
        if C % d == 0:
            best = d
    if best:
        return best
    # No aligned divisor fits the budget: take the smallest aligned divisor
    # (smallest possible overshoot) instead of the whole C.
    for d in range(cmul, C, cmul):
        if C % d == 0:
            return d
    return C  # no aligned divisor at all (rare, e.g. C = 2 * 5**k)


def _default_vmem_limit_bytes():
    # 128 MiB physical VMEM on v5e/v6e -> request 96 MiB; 64 MiB on v7x -> 48.
    try:
        cap = pltpu.get_tpu_info().vmem_capacity_bytes
    except Exception:
        cap = 64 * 1024 * 1024
    return int(min(96 * 1024 * 1024, cap * 3 // 4))


def spatial_attention(x, conv_weight, *, batch_block=8, c_block_bytes=None,
                      vmem_limit_bytes=None):
    """x: (N, C, H, W); conv_weight: (1, 2, 7, 7) -> out (N, 1, H, W)."""
    assert conv_weight.shape == (1, 2, KSIZE, KSIZE)
    N, C, H, W = x.shape
    HW = H * W
    HWp = ((HW + 127) // 128) * 128             # lane count used by the conv
    itemsize = jnp.dtype(x.dtype).itemsize
    slab = 8 * max(1, 4 // itemsize)            # sublane rows per vreg slab

    if vmem_limit_bytes is None:
        vmem_limit_bytes = _default_vmem_limit_bytes()
    if c_block_bytes is None:                   # ~12-16 MiB block, double-buffered
        c_block_bytes = int(min(16 << 20,
                                max(2 << 20, (vmem_limit_bytes - (8 << 20)) // 3)))

    TB = _pick_batch_block(N, batch_block * max(1, 4 // itemsize))
    max_tc = max(1, c_block_bytes // max(1, TB * HW * itemsize))
    TC = _pick_c_block(C, max_tc, slab)

    xf = x.reshape(N, C, HW)                    # contiguous reshape: no pad copy

    # Host-built border-mask tables: tap (dy, dx) is valid at output (h, w) iff
    # 0 <= h+dy-PAD < H and 0 <= w+dx-PAD < W.  Padded lanes (>= HW) map to
    # h >= H so they are never selected for valid outputs.
    lanes = jnp.arange(HWp, dtype=jnp.int32)
    hh, ww = lanes // W, lanes % W
    mh_tab = jnp.stack([(hh >= PAD - dy) & (hh < H + PAD - dy)
                        for dy in range(KSIZE)]).astype(jnp.int32)
    mw_tab = jnp.stack([(ww >= PAD - dx) & (ww < W + PAD - dx)
                        for dx in range(KSIZE)]).astype(jnp.int32)
    w_flat = conv_weight.reshape(-1).astype(jnp.float32)     # (2*7*7,) for SMEM

    kernel = functools.partial(_spatial_attention_kernel, C=C, H=H, W=W, HW=HW)
    out = pl.pallas_call(
        kernel,
        out_shape=jax.ShapeDtypeStruct((N, 1, HWp), x.dtype),
        grid=(N // TB, C // TC),
        in_specs=[
            pl.BlockSpec((TB, TC, HW), lambda n, k: (n, k, 0)),
            pl.BlockSpec((KSIZE, HWp), lambda n, k: (0, 0)),
            pl.BlockSpec((KSIZE, HWp), lambda n, k: (0, 0)),
            pl.BlockSpec(memory_space=pltpu.SMEM),   # conv taps (scalars)
        ],
        out_specs=pl.BlockSpec((TB, 1, HWp), lambda n, k: (n, 0, 0)),
        scratch_shapes=[pltpu.VMEM((TB, slab, HWp), jnp.float32),   # running sum
                        pltpu.VMEM((TB, slab, HWp), jnp.float32)],  # running max
        compiler_params=pltpu.CompilerParams(
            dimension_semantics=("parallel", "arbitrary"),
            vmem_limit_bytes=int(vmem_limit_bytes)),
    )(xf, mh_tab, mw_tab, w_flat)

    out = out[:, :, :HW] if HWp != HW else out
    return out.reshape(N, 1, H, W)


def _reference(x, conv_weight):
    """Pure-JAX reference matching the PyTorch forward."""
    avg = jnp.mean(x, axis=1, keepdims=True)
    mx = jnp.max(x, axis=1, keepdims=True)
    cat = jnp.concatenate([avg, mx], axis=1)
    y = lax.conv_general_dilated(
        cat.astype(jnp.float32), conv_weight.astype(jnp.float32),
        window_strides=(1, 1), padding=[(PAD, PAD), (PAD, PAD)],
        dimension_numbers=("NCHW", "OIHW", "NCHW"))
    return jax.nn.sigmoid(y).astype(x.dtype)


if __name__ == "__main__":
    key = jax.random.PRNGKey(0)
    kx, kw = jax.random.split(key)

    N, C, H, W = 2, 4, 16, 16
    x = jax.random.normal(kx, (N, C, H, W), dtype=jnp.float32)
    # Deterministic synthetic conv weight, shape (out=1, in=2, 7, 7), no bias.
    conv_weight = (jax.random.normal(kw, (1, 2, KSIZE, KSIZE), dtype=jnp.float32)
                   * (1.0 / (2 * KSIZE * KSIZE)) ** 0.5)

    out = jax.block_until_ready(spatial_attention(x, conv_weight))
    ref = _reference(x, conv_weight)

    assert out.shape == (N, 1, H, W)
    assert jnp.allclose(out, ref, atol=1e-5, rtol=1e-5), "mismatch vs reference"

    print("KERNEL_OK")
</pallas_src>

<mosaic_0001>
module attributes {stable_mosaic.version = 11 : i64} {
  func.func @_spatial_attention_kernel(%arg0: i32, %arg1: i32, %arg2: memref<1x4x256xf32, #tpu.memory_space<vmem>>, %arg3: memref<7x256xi32, #tpu.memory_space<vmem>>, %arg4: memref<7x256xi32, #tpu.memory_space<vmem>>, %arg5: memref<98xf32, #tpu.memory_space<smem>>, %arg6: memref<1x1x256xf32, #tpu.memory_space<vmem>>, %arg7: memref<1x8x256xf32, #tpu.memory_space<vmem>>, %arg8: memref<1x8x256xf32, #tpu.memory_space<vmem>>) attributes {dimension_semantics = [#tpu.dimension_semantics<parallel>, #tpu.dimension_semantics<arbitrary>], iteration_bounds = array<i64: 2, 1>, scalar_prefetch = 0 : i64, scratch_operands = 2 : i64, tpu.core_type = #tpu.core_type<tc>, window_params = [{transform_indices = @transform_0, window_bounds = array<i64: 1, 4, 256>}, {pipeline_mode = #tpu.pipeline_mode<synchronous>, transform_indices = @transform_1, window_bounds = array<i64: 7, 256>}, {pipeline_mode = #tpu.pipeline_mode<synchronous>, transform_indices = @transform_2, window_bounds = array<i64: 7, 256>}, {transform_indices = @transform_3, window_bounds = array<i64: 98>}, {transform_indices = @transform_4, window_bounds = array<i64: 1, 1, 256>}]} {
    %c0_i32 = arith.constant 0 : i32
    %0 = arith.cmpi eq, %arg1, %c0_i32 : i32
    %1 = arith.extui %0 : i1 to i32
    %c0_i32_0 = arith.constant 0 : i32
    %2 = arith.cmpi ne, %1, %c0_i32_0 : i32
    scf.if %2 {
      %cst = arith.constant 0.000000e+00 : f32
      %13 = vector.broadcast %cst : f32 to vector<1x8x256xf32>
      %c0_17 = arith.constant 0 : index
      %c0_18 = arith.constant 0 : index
      %c0_19 = arith.constant 0 : index
      %14 = vector.load %arg7[%c0_17, %c0_18, %c0_19] : memref<1x8x256xf32, #tpu.memory_space<vmem>>, vector<1x8x256xf32>
      tpu.vector_store %arg7[%c0_17, %c0_18, %c0_19], %13 {strides = array<i32>} : memref<1x8x256xf32, #tpu.memory_space<vmem>>, vector<1x8x256xf32>,
      %cst_20 = arith.constant 0xFF800000 : f32
      %15 = vector.broadcast %cst_20 : f32 to vector<1x8x256xf32>
      %c0_21 = arith.constant 0 : index
      %c0_22 = arith.constant 0 : index
      %c0_23 = arith.constant 0 : index
      %16 = vector.load %arg8[%c0_21, %c0_22, %c0_23] : memref<1x8x256xf32, #tpu.memory_space<vmem>>, vector<1x8x256xf32>
      tpu.vector_store %arg8[%c0_21, %c0_22, %c0_23], %15 {strides = array<i32>} : memref<1x8x256xf32, #tpu.memory_space<vmem>>, vector<1x8x256xf32>,
    } else {
    }
    %c0 = arith.constant 0 : index
    %c0_1 = arith.constant 0 : index
    %c0_2 = arith.constant 0 : index
    %3 = vector.load %arg2[%c0, %c0_1, %c0_2] : memref<1x4x256xf32, #tpu.memory_space<vmem>>, vector<1x4x256xf32>
    %c0_3 = arith.constant 0 : index
    %c0_4 = arith.constant 0 : index
    %c0_5 = arith.constant 0 : index
    %4 = vector.load %arg7[%c0_3, %c0_4, %c0_5] : memref<1x8x256xf32, #tpu.memory_space<vmem>>, vector<1x4x256xf32>
    %5 = arith.addf %4, %3 : vector<1x4x256xf32>
    %c0_6 = arith.constant 0 : index
    %c0_7 = arith.constant 0 : index
    %c0_8 = arith.constant 0 : index
    %6 = vector.load %arg7[%c0_6, %c0_7, %c0_8] : memref<1x8x256xf32, #tpu.memory_space<vmem>>, vector<1x4x256xf32>
    tpu.vector_store %arg7[%c0_6, %c0_7, %c0_8], %5 {strides = array<i32>} : memref<1x8x256xf32, #tpu.memory_space<vmem>>, vector<1x4x256xf32>,
    %c0_9 = arith.constant 0 : index
    %c0_10 = arith.constant 0 : index
    %c0_11 = arith.constant 0 : index
    %7 = vector.load %arg8[%c0_9, %c0_10, %c0_11] : memref<1x8x256xf32, #tpu.memory_space<vmem>>, vector<1x4x256xf32>
    %8 = arith.maximumf %7, %3 : vector<1x4x256xf32>
    %c0_12 = arith.constant 0 : index
    %c0_13 = arith.constant 0 : index
    %c0_14 = arith.constant 0 : index
    %9 = vector.load %arg8[%c0_12, %c0_13, %c0_14] : memref<1x8x256xf32, #tpu.memory_space<vmem>>, vector<1x4x256xf32>
    tpu.vector_store %arg8[%c0_12, %c0_13, %c0_14], %8 {strides = array<i32>} : memref<1x8x256xf32, #tpu.memory_space<vmem>>, vector<1x4x256xf32>,
    %c0_i32_15 = arith.constant 0 : i32
    %10 = arith.cmpi eq, %arg1, %c0_i32_15 : i32
    %11 = arith.extui %10 : i1 to i32
    %c0_i32_16 = arith.constant 0 : i32
    %12 = arith.cmpi ne, %11, %c0_i32_16 : i32
    scf.if %12 {
      %c0_17 = arith.constant 0 : index
      %c0_18 = arith.constant 0 : index
      %c0_19 = arith.constant 0 : index
      %13 = vector.load %arg7[%c0_17, %c0_18, %c0_19] : memref<1x8x256xf32, #tpu.memory_space<vmem>>, vector<1x8x256xf32>
      %cst = arith.constant dense<0.000000e+00> : vector<1x256xf32>
      %14 = vector.multi_reduction <add>, %13, %cst [1] : vector<1x8x256xf32> to vector<1x256xf32>
      %cst_20 = arith.constant 2.500000e-01 : f32
      %15 = vector.broadcast %cst_20 : f32 to vector<1x256xf32>
      %16 = arith.mulf %14, %15 : vector<1x256xf32>
      %c0_21 = arith.constant 0 : index
      %c0_22 = arith.constant 0 : index
      %c0_23 = arith.constant 0 : index
      %17 = vector.load %arg8[%c0_21, %c0_22, %c0_23] : memref<1x8x256xf32, #tpu.memory_space<vmem>>, vector<1x8x256xf32>
      %cst_24 = arith.constant dense<0xFF800000> : vector<1x256xf32>
      %18 = vector.multi_reduction <maximumf>, %17, %cst_24 [1] : vector<1x8x256xf32> to vector<1x256xf32>
      %c0_25 = arith.constant 0 : index
      %c0_26 = arith.constant 0 : index
      %19 = vector.load %arg3[%c0_25, %c0_26] : memref<7x256xi32, #tpu.memory_space<vmem>>, vector<1x256xi32>
      %c0_i32_27 = arith.constant 0 : i32
      %20 = vector.broadcast %c0_i32_27 : i32 to vector<1x256xi32>
      %21 = arith.cmpi ne, %19, %20 : vector<1x256xi32>
      %c48_i32 = arith.constant 48 : i32
      %22 = tpu.dynamic_rotate %16 by %c48_i32 dim 1 : vector<1x256xf32>, i32 -> vector<1x256xf32>
      %c48_i32_28 = arith.constant 48 : i32
      %23 = tpu.dynamic_rotate %18 by %c48_i32_28 dim 1 : vector<1x256xf32>, i32 -> vector<1x256xf32>
      %cst_29 = arith.constant 0.000000e+00 : f32
      %24 = vector.broadcast %cst_29 : f32 to vector<1x256xf32>
      %25 = arith.select %21, %22, %24 : vector<1x256xi1>, vector<1x256xf32>
      %cst_30 = arith.constant 0.000000e+00 : f32
      %26 = vector.broadcast %cst_30 : f32 to vector<1x256xf32>
      %27 = arith.select %21, %23, %26 : vector<1x256xi1>, vector<1x256xf32>
      %c1 = arith.constant 1 : index
      %c0_31 = arith.constant 0 : index
      %28 = vector.load %arg3[%c1, %c0_31] : memref<7x256xi32, #tpu.memory_space<vmem>>, vector<1x256xi32>
      %c0_i32_32 = arith.constant 0 : i32
      %29 = vector.broadcast %c0_i32_32 : i32 to vector<1x256xi32>
      %30 = arith.cmpi ne, %28, %29 : vector<1x256xi32>
      %c32_i32 = arith.constant 32 : i32
      %31 = tpu.dynamic_rotate %16 by %c32_i32 dim 1 : vector<1x256xf32>, i32 -> vector<1x256xf32>
      %c32_i32_33 = arith.constant 32 : i32
      %32 = tpu.dynamic_rotate %18 by %c32_i32_33 dim 1 : vector<1x256xf32>, i32 -> vector<1x256xf32>
      %cst_34 = arith.constant 0.000000e+00 : f32
      %33 = vector.broadcast %cst_34 : f32 to vector<1x256xf32>
      %34 = arith.select %30, %31, %33 : vector<1x256xi1>, vector<1x256xf32>
      %cst_35 = arith.constant 0.000000e+00 : f32
      %35 = vector.broadcast %cst_35 : f32 to vector<1x256xf32>
      %36 = arith.select %30, %32, %35 : vector<1x256xi1>, vector<1x256xf32>
      %c2 = arith.constant 2 : index
      %c0_36 = arith.constant 0 : index
      %37 = vector.load %arg3[%c2, %c0_36] : memref<7x256xi32, #tpu.memory_space<vmem>>, vector<1x256xi32>
      %c0_i32_37 = arith.constant 0 : i32
      %38 = vector.broadcast %c0_i32_37 : i32 to vector<1x256xi32>
      %39 = arith.cmpi ne, %37, %38 : vector<1x256xi32>
      %c16_i32 = arith.constant 16 : i32
      %40 = tpu.dynamic_rotate %16 by %c16_i32 dim 1 : vector<1x256xf32>, i32 -> vector<1x256xf32>
      %c16_i32_38 = arith.constant 16 : i32
      %41 = tpu.dynamic_rotate %18 by %c16_i32_38 dim 1 : vector<1x256xf32>, i32 -> vector<1x256xf32>
      %cst_39 = arith.constant 0.000000e+00 : f32
      %42 = vector.broadcast %cst_39 : f32 to vector<1x256xf32>
      %43 = arith.select %39, %40, %42 : vector<1x256xi1>, vector<1x256xf32>
      %cst_40 = arith.constant 0.000000e+00 : f32
      %44 = vector.broadcast %cst_40 : f32 to vector<1x256xf32>
      %45 = arith.select %39, %41, %44 : vector<1x256xi1>, vector<1x256xf32>
      %c3 = arith.constant 3 : index
      %c0_41 = arith.constant 0 : index
      %46 = vector.load %arg3[%c3, %c0_41] : memref<7x256xi32, #tpu.memory_space<vmem>>, vector<1x256xi32>
      %c0_i32_42 = arith.constant 0 : i32
      %47 = vector.broadcast %c0_i32_42 : i32 to vector<1x256xi32>
      %48 = arith.cmpi ne, %46, %47 : vector<1x256xi32>
      %cst_43 = arith.constant 0.000000e+00 : f32
      %49 = vector.broadcast %cst_43 : f32 to vector<1x256xf32>
      %50 = arith.select %48, %16, %49 : vector<1x256xi1>, vector<1x256xf32>
      %cst_44 = arith.constant 0.000000e+00 : f32
      %51 = vector.broadcast %cst_44 : f32 to vector<1x256xf32>
      %52 = arith.select %48, %18, %51 : vector<1x256xi1>, vector<1x256xf32>
      %c4 = arith.constant 4 : index
      %c0_45 = arith.constant 0 : index
      %53 = vector.load %arg3[%c4, %c0_45] : memref<7x256xi32, #tpu.memory_space<vmem>>, vector<1x256xi32>
      %c0_i32_46 = arith.constant 0 : i32
      %54 = vector.broadcast %c0_i32_46 : i32 to vector<1x256xi32>
      %55 = arith.cmpi ne, %53, %54 : vector<1x256xi32>
      %c240_i32 = arith.constant 240 : i32
      %56 = tpu.dynamic_rotate %16 by %c240_i32 dim 1 : vector<1x256xf32>, i32 -> vector<1x256xf32>
      %c240_i32_47 = arith.constant 240 : i32
      %57 = tpu.dynamic_rotate %18 by %c240_i32_47 dim 1 : vector<1x256xf32>, i32 -> vector<1x256xf32>
      %cst_48 = arith.constant 0.000000e+00 : f32
      %58 = vector.broadcast %cst_48 : f32 to vector<1x256xf32>
      %59 = arith.select %55, %56, %58 : vector<1x256xi1>, vector<1x256xf32>
      %cst_49 = arith.constant 0.000000e+00 : f32
      %60 = vector.broadcast %cst_49 : f32 to vector<1x256xf32>
      %61 = arith.select %55, %57, %60 : vector<1x256xi1>, vector<1x256xf32>
      %c5 = arith.constant 5 : index
      %c0_50 = arith.constant 0 : index
      %62 = vector.load %arg3[%c5, %c0_50] : memref<7x256xi32, #tpu.memory_space<vmem>>, vector<1x256xi32>
      %c0_i32_51 = arith.constant 0 : i32
      %63 = vector.broadcast %c0_i32_51 : i32 to vector<1x256xi32>
      %64 = arith.cmpi ne, %62, %63 : vector<1x256xi32>
      %c224_i32 = arith.constant 224 : i32
      %65 = tpu.dynamic_rotate %16 by %c224_i32 dim 1 : vector<1x256xf32>, i32 -> vector<1x256xf32>
      %c224_i32_52 = arith.constant 224 : i32
      %66 = tpu.dynamic_rotate %18 by %c224_i32_52 dim 1 : vector<1x256xf32>, i32 -> vector<1x256xf32>
      %cst_53 = arith.constant 0.000000e+00 : f32
      %67 = vector.broadcast %cst_53 : f32 to vector<1x256xf32>
      %68 = arith.select %64, %65, %67 : vector<1x256xi1>, vector<1x256xf32>
      %cst_54 = arith.constant 0.000000e+00 : f32
      %69 = vector.broadcast %cst_54 : f32 to vector<1x256xf32>
      %70 = arith.select %64, %66, %69 : vector<1x256xi1>, vector<1x256xf32>
      %c6 = arith.constant 6 : index
      %c0_55 = arith.constant 0 : index
      %71 = vector.load %arg3[%c6, %c0_55] : memref<7x256xi32, #tpu.memory_space<vmem>>, vector<1x256xi32>
      %c0_i32_56 = arith.constant 0 : i32
      %72 = vector.broadcast %c0_i32_56 : i32 to vector<1x256xi32>
      %73 = arith.cmpi ne, %71, %72 : vector<1x256xi32>
      %c208_i32 = arith.constant 208 : i32
      %74 = tpu.dynamic_rotate %16 by %c208_i32 dim 1 : vector<1x256xf32>, i32 -> vector<1x256xf32>
      %c208_i32_57 = arith.constant 208 : i32
      %75 = tpu.dynamic_rotate %18 by %c208_i32_57 dim 1 : vector<1x256xf32>, i32 -> vector<1x256xf32>
      %cst_58 = arith.constant 0.000000e+00 : f32
      %76 = vector.broadcast %cst_58 : f32 to vector<1x256xf32>
      %77 = arith.select %73, %74, %76 : vector<1x256xi1>, vector<1x256xf32>
      %cst_59 = arith.constant 0.000000e+00 : f32
      %78 = vector.broadcast %cst_59 : f32 to vector<1x256xf32>
      %79 = arith.select %73, %75, %78 : vector<1x256xi1>, vector<1x256xf32>
      %cst_60 = arith.constant 0.000000e+00 : f32
      %80 = vector.broadcast %cst_60 : f32 to vector<1x256xf32>
      %cst_61 = arith.constant 0.000000e+00 : f32
      %81 = vector.broadcast %cst_61 : f32 to vector<1x256xf32>
      %c0_62 = arith.constant 0 : index
      %82 = memref.load %arg5[%c0_62] : memref<98xf32, #tpu.memory_space<smem>>
      %83 = vector.broadcast %82 : f32 to vector<1x256xf32>
      %84 = arith.mulf %25, %83 : vector<1x256xf32>
      %85 = arith.addf %81, %84 : vector<1x256xf32>
      %c49 = arith.constant 49 : index
      %86 = memref.load %arg5[%c49] : memref<98xf32, #tpu.memory_space<smem>>
      %87 = vector.broadcast %86 : f32 to vector<1x256xf32>
      %88 = arith.mulf %27, %87 : vector<1x256xf32>
      %89 = arith.addf %85, %88 : vector<1x256xf32>
      %c7 = arith.constant 7 : index
      %90 = memref.load %arg5[%c7] : memref<98xf32, #tpu.memory_space<smem>>
      %91 = vector.broadcast %90 : f32 to vector<1x256xf32>
      %92 = arith.mulf %34, %91 : vector<1x256xf32>
      %93 = arith.addf %89, %92 : vector<1x256xf32>
      %c56 = arith.constant 56 : index
      %94 = memref.load %arg5[%c56] : memref<98xf32, #tpu.memory_space<smem>>
      %95 = vector.broadcast %94 : f32 to vector<1x256xf32>
      %96 = arith.mulf %36, %95 : vector<1x256xf32>
      %97 = arith.addf %93, %96 : vector<1x256xf32>
      %c14 = arith.constant 14 : index
      %98 = memref.load %arg5[%c14] : memref<98xf32, #tpu.memory_space<smem>>
      %99 = vector.broadcast %98 : f32 to vector<1x256xf32>
      %100 = arith.mulf %43, %99 : vector<1x256xf32>
      %101 = arith.addf %97, %100 : vector<1x256xf32>
      %c63 = arith.constant 63 : index
      %102 = memref.load %arg5[%c63] : memref<98xf32, #tpu.memory_space<smem>>
      %103 = vector.broadcast %102 : f32 to vector<1x256xf32>
      %104 = arith.mulf %45, %103 : vector<1x256xf32>
      %105 = arith.addf %101, %104 : vector<1x256xf32>
      %c21 = arith.constant 21 : index
      %106 = memref.load %arg5[%c21] : memref<98xf32, #tpu.memory_space<smem>>
      %107 = vector.broadcast %106 : f32 to vector<1x256xf32>
      %108 = arith.mulf %50, %107 : vector<1x256xf32>
      %109 = arith.addf %105, %108 : vector<1x256xf32>
      %c70 = arith.constant 70 : index
      %110 = memref.load %arg5[%c70] : memref<98xf32, #tpu.memory_space<smem>>
      %111 = vector.broadcast %110 : f32 to vector<1x256xf32>
      %112 = arith.mulf %52, %111 : vector<1x256xf32>
      %113 = arith.addf %109, %112 : vector<1x256xf32>
      %c28 = arith.constant 28 : index
      %114 = memref.load %arg5[%c28] : memref<98xf32, #tpu.memory_space<smem>>
      %115 = vector.broadcast %114 : f32 to vector<1x256xf32>
      %116 = arith.mulf %59, %115 : vector<1x256xf32>
      %117 = arith.addf %113, %116 : vector<1x256xf32>
      %c77 = arith.constant 77 : index
      %118 = memref.load %arg5[%c77] : memref<98xf32, #tpu.memory_space<smem>>
      %119 = vector.broadcast %118 : f32 to vector<1x256xf32>
      %120 = arith.mulf %61, %119 : vector<1x256xf32>
      %121 = arith.addf %117, %120 : vector<1x256xf32>
      %c35 = arith.constant 35 : index
      %122 = memref.load %arg5[%c35] : memref<98xf32, #tpu.memory_space<smem>>
      %123 = vector.broadcast %122 : f32 to vector<1x256xf32>
      %124 = arith.mulf %68, %123 : vector<1x256xf32>
      %125 = arith.addf %121, %124 : vector<1x256xf32>
      %c84 = arith.constant 84 : index
      %126 = memref.load %arg5[%c84] : memref<98xf32, #tpu.memory_space<smem>>
      %127 = vector.broadcast %126 : f32 to vector<1x256xf32>
      %128 = arith.mulf %70, %127 : vector<1x256xf32>
      %129 = arith.addf %125, %128 : vector<1x256xf32>
      %c42 = arith.constant 42 : index
      %130 = memref.load %arg5[%c42] : memref<98xf32, #tpu.memory_space<smem>>
      %131 = vector.broadcast %130 : f32 to vector<1x256xf32>
      %132 = arith.mulf %77, %131 : vector<1x256xf32>
      %133 = arith.addf %129, %132 : vector<1x256xf32>
      %c91 = arith.constant 91 : index
      %134 = memref.load %arg5[%c91] : memref<98xf32, #tpu.memory_space<smem>>
      %135 = vector.broadcast %134 : f32 to vector<1x256xf32>
      %136 = arith.mulf %79, %135 : vector<1x256xf32>
      %137 = arith.addf %133, %136 : vector<1x256xf32>
      %c3_i32 = arith.constant 3 : i32
      %138 = tpu.dynamic_rotate %137 by %c3_i32 dim 1 : vector<1x256xf32>, i32 -> vector<1x256xf32>
      %c0_63 = arith.constant 0 : index
      %c0_64 = arith.constant 0 : index
      %139 = vector.load %arg4[%c0_63, %c0_64] : memref<7x256xi32, #tpu.memory_space<vmem>>, vector<1x256xi32>
      %c0_i32_65 = arith.constant 0 : i32
      %140 = vector.broadcast %c0_i32_65 : i32 to vector<1x256xi32>
      %141 = arith.cmpi ne, %139, %140 : vector<1x256xi32>
      %cst_66 = arith.constant 0.000000e+00 : f32
      %142 = vector.broadcast %cst_66 : f32 to vector<1x256xf32>
      %143 = arith.select %141, %138, %142 : vector<1x256xi1>, vector<1x256xf32>
      %144 = arith.addf %80, %143 : vector<1x256xf32>
      %cst_67 = arith.constant 0.000000e+00 : f32
      %145 = vector.broadcast %cst_67 : f32 to vector<1x256xf32>
      %c1_68 = arith.constant 1 : index
      %146 = memref.load %arg5[%c1_68] : memref<98xf32, #tpu.memory_space<smem>>
      %147 = vector.broadcast %146 : f32 to vector<1x256xf32>
      %148 = arith.mulf %25, %147 : vector<1x256xf32>
      %149 = arith.addf %145, %148 : vector<1x256xf32>
      %c50 = arith.constant 50 : index
      %150 = memref.load %arg5[%c50] : memref<98xf32, #tpu.memory_space<smem>>
      %151 = vector.broadcast %150 : f32 to vector<1x256xf32>
      %152 = arith.mulf %27, %151 : vector<1x256xf32>
      %153 = arith.addf %149, %152 : vector<1x256xf32>
      %c8 = arith.constant 8 : index
      %154 = memref.load %arg5[%c8] : memref<98xf32, #tpu.memory_space<smem>>
      %155 = vector.broadcast %154 : f32 to vector<1x256xf32>
      %156 = arith.mulf %34, %155 : vector<1x256xf32>
      %157 = arith.addf %153, %156 : vector<1x256xf32>
      %c57 = arith.constant 57 : index
      %158 = memref.load %arg5[%c57] : memref<98xf32, #tpu.memory_space<smem>>
      %159 = vector.broadcast %158 : f32 to vector<1x256xf32>
      %160 = arith.mulf %36, %159 : vector<1x256xf32>
      %161 = arith.addf %157, %160 : vector<1x256xf32>
      %c15 = arith.constant 15 : index
      %162 = memref.load %arg5[%c15] : memref<98xf32, #tpu.memory_space<smem>>
      %163 = vector.broadcast %162 : f32 to vector<1x256xf32>
      %164 = arith.mulf %43, %163 : vector<1x256xf32>
      %165 = arith.addf %161, %164 : vector<1x256xf32>
      %c64 = arith.constant 64 : index
      %166 = memref.load %arg5[%c64] : memref<98xf32, #tpu.memory_space<smem>>
      %167 = vector.broadcast %166 : f32 to vector<1x256xf32>
      %168 = arith.mulf %45, %167 : vector<1x256xf32>
      %169 = arith.addf %165, %168 : vector<1x256xf32>
      %c22 = arith.constant 22 : index
      %170 = memref.load %arg5[%c22] : memref<98xf32, #tpu.memory_space<smem>>
      %171 = vector.broadcast %170 : f32 to vector<1x256xf32>
      %172 = arith.mulf %50, %171 : vector<1x256xf32>
      %173 = arith.addf %169, %172 : vector<1x256xf32>
      %c71 = arith.constant 71 : index
      %174 = memref.load %arg5[%c71] : memref<98xf32, #tpu.memory_space<smem>>
      %175 = vector.broadcast %174 : f32 to vector<1x256xf32>
      %176 = arith.mulf %52, %175 : vector<1x256xf32>
      %177 = arith.addf %173, %176 : vector<1x256xf32>
      %c29 = arith.constant 29 : index
      %178 = memref.load %arg5[%c29] : memref<98xf32, #tpu.memory_space<smem>>
      %179 = vector.broadcast %178 : f32 to vector<1x256xf32>
      %180 = arith.mulf %59, %179 : vector<1x256xf32>
      %181 = arith.addf %177, %180 : vector<1x256xf32>
      %c78 = arith.constant 78 : index
      %182 = memref.load %arg5[%c78] : memref<98xf32, #tpu.memory_space<smem>>
      %183 = vector.broadcast %182 : f32 to vector<1x256xf32>
      %184 = arith.mulf %61, %183 : vector<1x256xf32>
      %185 = arith.addf %181, %184 : vector<1x256xf32>
      %c36 = arith.constant 36 : index
      %186 = memref.load %arg5[%c36] : memref<98xf32, #tpu.memory_space<smem>>
      %187 = vector.broadcast %186 : f32 to vector<1x256xf32>
      %188 = arith.mulf %68, %187 : vector<1x256xf32>
      %189 = arith.addf %185, %188 : vector<1x256xf32>
      %c85 = arith.constant 85 : index
      %190 = memref.load %arg5[%c85] : memref<98xf32, #tpu.memory_space<smem>>
      %191 = vector.broadcast %190 : f32 to vector<1x256xf32>
      %192 = arith.mulf %70, %191 : vector<1x256xf32>
      %193 = arith.addf %189, %192 : vector<1x256xf32>
      %c43 = arith.constant 43 : index
      %194 = memref.load %arg5[%c43] : memref<98xf32, #tpu.memory_space<smem>>
      %195 = vector.broadcast %194 : f32 to vector<1x256xf32>
      %196 = arith.mulf %77, %195 : vector<1x256xf32>
      %197 = arith.addf %193, %196 : vector<1x256xf32>
      %c92 = arith.constant 92 : index
      %198 = memref.load %arg5[%c92] : memref<98xf32, #tpu.memory_space<smem>>
      %199 = vector.broadcast %198 : f32 to vector<1x256xf32>
      %200 = arith.mulf %79, %199 : vector<1x256xf32>
      %201 = arith.addf %197, %200 : vector<1x256xf32>
      %c2_i32 = arith.constant 2 : i32
      %202 = tpu.dynamic_rotate %201 by %c2_i32 dim 1 : vector<1x256xf32>, i32 -> vector<1x256xf32>
      %c1_69 = arith.constant 1 : index
      %c0_70 = arith.constant 0 : index
      %203 = vector.load %arg4[%c1_69, %c0_70] : memref<7x256xi32, #tpu.memory_space<vmem>>, vector<1x256xi32>
      %c0_i32_71 = arith.constant 0 : i32
      %204 = vector.broadcast %c0_i32_71 : i32 to vector<1x256xi32>
      %205 = arith.cmpi ne, %203, %204 : vector<1x256xi32>
      %cst_72 = arith.constant 0.000000e+00 : f32
      %206 = vector.broadcast %cst_72 : f32 to vector<1x256xf32>
      %207 = arith.select %205, %202, %206 : vector<1x256xi1>, vector<1x256xf32>
      %208 = arith.addf %144, %207 : vector<1x256xf32>
      %cst_73 = arith.constant 0.000000e+00 : f32
      %209 = vector.broadcast %cst_73 : f32 to vector<1x256xf32>
      %c2_74 = arith.constant 2 : index
      %210 = memref.load %arg5[%c2_74] : memref<98xf32, #tpu.memory_space<smem>>
      %211 = vector.broadcast %210 : f32 to vector<1x256xf32>
      %212 = arith.mulf %25, %211 : vector<1x256xf32>
      %213 = arith.addf %209, %212 : vector<1x256xf32>
      %c51 = arith.constant 51 : index
      %214 = memref.load %arg5[%c51] : memref<98xf32, #tpu.memory_space<smem>>
      %215 = vector.broadcast %214 : f32 to vector<1x256xf32>
      %216 = arith.mulf %27, %215 : vector<1x256xf32>
      %217 = arith.addf %213, %216 : vector<1x256xf32>
      %c9 = arith.constant 9 : index
      %218 = memref.load %arg5[%c9] : memref<98xf32, #tpu.memory_space<smem>>
      %219 = vector.broadcast %218 : f32 to vector<1x256xf32>
      %220 = arith.mulf %34, %219 : vector<1x256xf32>
      %221 = arith.addf %217, %220 : vector<1x256xf32>
      %c58 = arith.constant 58 : index
      %222 = memref.load %arg5[%c58] : memref<98xf32, #tpu.memory_space<smem>>
      %223 = vector.broadcast %222 : f32 to vector<1x256xf32>
      %224 = arith.mulf %36, %223 : vector<1x256xf32>
      %225 = arith.addf %221, %224 : vector<1x256xf32>
      %c16 = arith.constant 16 : index
      %226 = memref.load %arg5[%c16] : memref<98xf32, #tpu.memory_space<smem>>
      %227 = vector.broadcast %226 : f32 to vector<1x256xf32>
      %228 = arith.mulf %43, %227 : vector<1x256xf32>
      %229 = arith.addf %225, %228 : vector<1x256xf32>
      %c65 = arith.constant 65 : index
      %230 = memref.load %arg5[%c65] : memref<98xf32, #tpu.memory_space<smem>>
      %231 = vector.broadcast %230 : f32 to vector<1x256xf32>
      %232 = arith.mulf %45, %231 : vector<1x256xf32>
      %233 = arith.addf %229, %232 : vector<1x256xf32>
      %c23 = arith.constant 23 : index
      %234 = memref.load %arg5[%c23] : memref<98xf32, #tpu.memory_space<smem>>
      %235 = vector.broadcast %234 : f32 to vector<1x256xf32>
      %236 = arith.mulf %50, %235 : vector<1x256xf32>
      %237 = arith.addf %233, %236 : vector<1x256xf32>
      %c72 = arith.constant 72 : index
      %238 = memref.load %arg5[%c72] : memref<98xf32, #tpu.memory_space<smem>>
      %239 = vector.broadcast %238 : f32 to vector<1x256xf32>
      %240 = arith.mulf %52, %239 : vector<1x256xf32>
      %241 = arith.addf %237, %240 : vector<1x256xf32>
      %c30 = arith.constant 30 : index
      %242 = memref.load %arg5[%c30] : memref<98xf32, #tpu.memory_space<smem>>
      %243 = vector.broadcast %242 : f32 to vector<1x256xf32>
      %244 = arith.mulf %59, %243 : vector<1x256xf32>
      %245 = arith.addf %241, %244 : vector<1x256xf32>
      %c79 = arith.constant 79 : index
      %246 = memref.load %arg5[%c79] : memref<98xf32, #tpu.memory_space<smem>>
      %247 = vector.broadcast %246 : f32 to vector<1x256xf32>
      %248 = arith.mulf %61, %247 : vector<1x256xf32>
      %249 = arith.addf %245, %248 : vector<1x256xf32>
      %c37 = arith.constant 37 : index
      %250 = memref.load %arg5[%c37] : memref<98xf32, #tpu.memory_space<smem>>
      %251 = vector.broadcast %250 : f32 to vector<1x256xf32>
      %252 = arith.mulf %68, %251 : vector<1x256xf32>
      %253 = arith.addf %249, %252 : vector<1x256xf32>
      %c86 = arith.constant 86 : index
      %254 = memref.load %arg5[%c86] : memref<98xf32, #tpu.memory_space<smem>>
      %255 = vector.broadcast %254 : f32 to vector<1x256xf32>
      %256 = arith.mulf %70, %255 : vector<1x256xf32>
      %257 = arith.addf %253, %256 : vector<1x256xf32>
      %c44 = arith.constant 44 : index
      %258 = memref.load %arg5[%c44] : memref<98xf32, #tpu.memory_space<smem>>
      %259 = vector.broadcast %258 : f32 to vector<1x256xf32>
      %260 = arith.mulf %77, %259 : vector<1x256xf32>
      %261 = arith.addf %257, %260 : vector<1x256xf32>
      %c93 = arith.constant 93 : index
      %262 = memref.load %arg5[%c93] : memref<98xf32, #tpu.memory_space<smem>>
      %263 = vector.broadcast %262 : f32 to vector<1x256xf32>
      %264 = arith.mulf %79, %263 : vector<1x256xf32>
      %265 = arith.addf %261, %264 : vector<1x256xf32>
      %c1_i32 = arith.constant 1 : i32
      %266 = tpu.dynamic_rotate %265 by %c1_i32 dim 1 : vector<1x256xf32>, i32 -> vector<1x256xf32>
      %c2_75 = arith.constant 2 : index
      %c0_76 = arith.constant 0 : index
      %267 = vector.load %arg4[%c2_75, %c0_76] : memref<7x256xi32, #tpu.memory_space<vmem>>, vector<1x256xi32>
      %c0_i32_77 = arith.constant 0 : i32
      %268 = vector.broadcast %c0_i32_77 : i32 to vector<1x256xi32>
      %269 = arith.cmpi ne, %267, %268 : vector<1x256xi32>
      %cst_78 = arith.constant 0.000000e+00 : f32
      %270 = vector.broadcast %cst_78 : f32 to vector<1x256xf32>
      %271 = arith.select %269, %266, %270 : vector<1x256xi1>, vector<1x256xf32>
      %272 = arith.addf %208, %271 : vector<1x256xf32>
      %cst_79 = arith.constant 0.000000e+00 : f32
      %273 = vector.broadcast %cst_79 : f32 to vector<1x256xf32>
      %c3_80 = arith.constant 3 : index
      %274 = memref.load %arg5[%c3_80] : memref<98xf32, #tpu.memory_space<smem>>
      %275 = vector.broadcast %274 : f32 to vector<1x256xf32>
      %276 = arith.mulf %25, %275 : vector<1x256xf32>
      %277 = arith.addf %273, %276 : vector<1x256xf32>
      %c52 = arith.constant 52 : index
      %278 = memref.load %arg5[%c52] : memref<98xf32, #tpu.memory_space<smem>>
      %279 = vector.broadcast %278 : f32 to vector<1x256xf32>
      %280 = arith.mulf %27, %279 : vector<1x256xf32>
      %281 = arith.addf %277, %280 : vector<1x256xf32>
      %c10 = arith.constant 10 : index
      %282 = memref.load %arg5[%c10] : memref<98xf32, #tpu.memory_space<smem>>
      %283 = vector.broadcast %282 : f32 to vector<1x256xf32>
      %284 = arith.mulf %34, %283 : vector<1x256xf32>
      %285 = arith.addf %281, %284 : vector<1x256xf32>
      %c59 = arith.constant 59 : index
      %286 = memref.load %arg5[%c59] : memref<98xf32, #tpu.memory_space<smem>>
      %287 = vector.broadcast %286 : f32 to vector<1x256xf32>
      %288 = arith.mulf %36, %287 : vector<1x256xf32>
      %289 = arith.addf %285, %288 : vector<1x256xf32>
      %c17 = arith.constant 17 : index
      %290 = memref.load %arg5[%c17] : memref<98xf32, #tpu.memory_space<smem>>
      %291 = vector.broadcast %290 : f32 to vector<1x256xf32>
      %292 = arith.mulf %43, %291 : vector<1x256xf32>
      %293 = arith.addf %289, %292 : vector<1x256xf32>
      %c66 = arith.constant 66 : index
      %294 = memref.load %arg5[%c66] : memref<98xf32, #tpu.memory_space<smem>>
      %295 = vector.broadcast %294 : f32 to vector<1x256xf32>
      %296 = arith.mulf %45, %295 : vector<1x256xf32>
      %297 = arith.addf %293, %296 : vector<1x256xf32>
      %c24 = arith.constant 24 : index
      %298 = memref.load %arg5[%c24] : memref<98xf32, #tpu.memory_space<smem>>
      %299 = vector.broadcast %298 : f32 to vector<1x256xf32>
      %300 = arith.mulf %50, %299 : vector<1x256xf32>
      %301 = arith.addf %297, %300 : vector<1x256xf32>
      %c73 = arith.constant 73 : index
      %302 = memref.load %arg5[%c73] : memref<98xf32, #tpu.memory_space<smem>>
      %303 = vector.broadcast %302 : f32 to vector<1x256xf32>
      %304 = arith.mulf %52, %303 : vector<1x256xf32>
      %305 = arith.addf %301, %304 : vector<1x256xf32>
      %c31 = arith.constant 31 : index
      %306 = memref.load %arg5[%c31] : memref<98xf32, #tpu.memory_space<smem>>
      %307 = vector.broadcast %306 : f32 to vector<1x256xf32>
      %308 = arith.mulf %59, %307 : vector<1x256xf32>
      %309 = arith.addf %305, %308 : vector<1x256xf32>
      %c80 = arith.constant 80 : index
      %310 = memref.load %arg5[%c80] : memref<98xf32, #tpu.memory_space<smem>>
      %311 = vector.broadcast %310 : f32 to vector<1x256xf32>
      %312 = arith.mulf %61, %311 : vector<1x256xf32>
      %313 = arith.addf %309, %312 : vector<1x256xf32>
      %c38 = arith.constant 38 : index
      %314 = memref.load %arg5[%c38] : memref<98xf32, #tpu.memory_space<smem>>
      %315 = vector.broadcast %314 : f32 to vector<1x256xf32>
      %316 = arith.mulf %68, %315 : vector<1x256xf32>
      %317 = arith.addf %313, %316 : vector<1x256xf32>
      %c87 = arith.constant 87 : index
      %318 = memref.load %arg5[%c87] : memref<98xf32, #tpu.memory_space<smem>>
      %319 = vector.broadcast %318 : f32 to vector<1x256xf32>
      %320 = arith.mulf %70, %319 : vector<1x256xf32>
      %321 = arith.addf %317, %320 : vector<1x256xf32>
      %c45 = arith.constant 45 : index
      %322 = memref.load %arg5[%c45] : memref<98xf32, #tpu.memory_space<smem>>
      %323 = vector.broadcast %322 : f32 to vector<1x256xf32>
      %324 = arith.mulf %77, %323 : vector<1x256xf32>
      %325 = arith.addf %321, %324 : vector<1x256xf32>
      %c94 = arith.constant 94 : index
      %326 = memref.load %arg5[%c94] : memref<98xf32, #tpu.memory_space<smem>>
      %327 = vector.broadcast %326 : f32 to vector<1x256xf32>
      %328 = arith.mulf %79, %327 : vector<1x256xf32>
      %329 = arith.addf %325, %328 : vector<1x256xf32>
      %c3_81 = arith.constant 3 : index
      %c0_82 = arith.constant 0 : index
      %330 = vector.load %arg4[%c3_81, %c0_82] : memref<7x256xi32, #tpu.memory_space<vmem>>, vector<1x256xi32>
      %c0_i32_83 = arith.constant 0 : i32
      %331 = vector.broadcast %c0_i32_83 : i32 to vector<1x256xi32>
      %332 = arith.cmpi ne, %330, %331 : vector<1x256xi32>
      %cst_84 = arith.constant 0.000000e+00 : f32
      %333 = vector.broadcast %cst_84 : f32 to vector<1x256xf32>
      %334 = arith.select %332, %329, %333 : vector<1x256xi1>, vector<1x256xf32>
      %335 = arith.addf %272, %334 : vector<1x256xf32>
      %cst_85 = arith.constant 0.000000e+00 : f32
      %336 = vector.broadcast %cst_85 : f32 to vector<1x256xf32>
      %c4_86 = arith.constant 4 : index
      %337 = memref.load %arg5[%c4_86] : memref<98xf32, #tpu.memory_space<smem>>
      %338 = vector.broadcast %337 : f32 to vector<1x256xf32>
      %339 = arith.mulf %25, %338 : vector<1x256xf32>
      %340 = arith.addf %336, %339 : vector<1x256xf32>
      %c53 = arith.constant 53 : index
      %341 = memref.load %arg5[%c53] : memref<98xf32, #tpu.memory_space<smem>>
      %342 = vector.broadcast %341 : f32 to vector<1x256xf32>
      %343 = arith.mulf %27, %342 : vector<1x256xf32>
      %344 = arith.addf %340, %343 : vector<1x256xf32>
      %c11 = arith.constant 11 : index
      %345 = memref.load %arg5[%c11] : memref<98xf32, #tpu.memory_space<smem>>
      %346 = vector.broadcast %345 : f32 to vector<1x256xf32>
      %347 = arith.mulf %34, %346 : vector<1x256xf32>
      %348 = arith.addf %344, %347 : vector<1x256xf32>
      %c60 = arith.constant 60 : index
      %349 = memref.load %arg5[%c60] : memref<98xf32, #tpu.memory_space<smem>>
      %350 = vector.broadcast %349 : f32 to vector<1x256xf32>
      %351 = arith.mulf %36, %350 : vector<1x256xf32>
      %352 = arith.addf %348, %351 : vector<1x256xf32>
      %c18 = arith.constant 18 : index
      %353 = memref.load %arg5[%c18] : memref<98xf32, #tpu.memory_space<smem>>
      %354 = vector.broadcast %353 : f32 to vector<1x256xf32>
      %355 = arith.mulf %43, %354 : vector<1x256xf32>
      %356 = arith.addf %352, %355 : vector<1x256xf32>
      %c67 = arith.constant 67 : index
      %357 = memref.load %arg5[%c67] : memref<98xf32, #tpu.memory_space<smem>>
      %358 = vector.broadcast %357 : f32 to vector<1x256xf32>
      %359 = arith.mulf %45, %358 : vector<1x256xf32>
      %360 = arith.addf %356, %359 : vector<1x256xf32>
      %c25 = arith.constant 25 : index
      %361 = memref.load %arg5[%c25] : memref<98xf32, #tpu.memory_space<smem>>
      %362 = vector.broadcast %361 : f32 to vector<1x256xf32>
      %363 = arith.mulf %50, %362 : vector<1x256xf32>
      %364 = arith.addf %360, %363 : vector<1x256xf32>
      %c74 = arith.constant 74 : index
      %365 = memref.load %arg5[%c74] : memref<98xf32, #tpu.memory_space<smem>>
      %366 = vector.broadcast %365 : f32 to vector<1x256xf32>
      %367 = arith.mulf %52, %366 : vector<1x256xf32>
      %368 = arith.addf %364, %367 : vector<1x256xf32>
      %c32 = arith.constant 32 : index
      %369 = memref.load %arg5[%c32] : memref<98xf32, #tpu.memory_space<smem>>
      %370 = vector.broadcast %369 : f32 to vector<1x256xf32>
      %371 = arith.mulf %59, %370 : vector<1x256xf32>
      %372 = arith.addf %368, %371 : vector<1x256xf32>
      %c81 = arith.constant 81 : index
      %373 = memref.load %arg5[%c81] : memref<98xf32, #tpu.memory_space<smem>>
      %374 = vector.broadcast %373 : f32 to vector<1x256xf32>
      %375 = arith.mulf %61, %374 : vector<1x256xf32>
      %376 = arith.addf %372, %375 : vector<1x256xf32>
      %c39 = arith.constant 39 : index
      %377 = memref.load %arg5[%c39] : memref<98xf32, #tpu.memory_space<smem>>
      %378 = vector.broadcast %377 : f32 to vector<1x256xf32>
      %379 = arith.mulf %68, %378 : vector<1x256xf32>
      %380 = arith.addf %376, %379 : vector<1x256xf32>
      %c88 = arith.constant 88 : index
      %381 = memref.load %arg5[%c88] : memref<98xf32, #tpu.memory_space<smem>>
      %382 = vector.broadcast %381 : f32 to vector<1x256xf32>
      %383 = arith.mulf %70, %382 : vector<1x256xf32>
      %384 = arith.addf %380, %383 : vector<1x256xf32>
      %c46 = arith.constant 46 : index
      %385 = memref.load %arg5[%c46] : memref<98xf32, #tpu.memory_space<smem>>
      %386 = vector.broadcast %385 : f32 to vector<1x256xf32>
      %387 = arith.mulf %77, %386 : vector<1x256xf32>
      %388 = arith.addf %384, %387 : vector<1x256xf32>
      %c95 = arith.constant 95 : index
      %389 = memref.load %arg5[%c95] : memref<98xf32, #tpu.memory_space<smem>>
      %390 = vector.broadcast %389 : f32 to vector<1x256xf32>
      %391 = arith.mulf %79, %390 : vector<1x256xf32>
      %392 = arith.addf %388, %391 : vector<1x256xf32>
      %c255_i32 = arith.constant 255 : i32
      %393 = tpu.dynamic_rotate %392 by %c255_i32 dim 1 : vector<1x256xf32>, i32 -> vector<1x256xf32>
      %c4_87 = arith.constant 4 : index
      %c0_88 = arith.constant 0 : index
      %394 = vector.load %arg4[%c4_87, %c0_88] : memref<7x256xi32, #tpu.memory_space<vmem>>, vector<1x256xi32>
      %c0_i32_89 = arith.constant 0 : i32
      %395 = vector.broadcast %c0_i32_89 : i32 to vector<1x256xi32>
      %396 = arith.cmpi ne, %394, %395 : vector<1x256xi32>
      %cst_90 = arith.constant 0.000000e+00 : f32
      %397 = vector.broadcast %cst_90 : f32 to vector<1x256xf32>
      %398 = arith.select %396, %393, %397 : vector<1x256xi1>, vector<1x256xf32>
      %399 = arith.addf %335, %398 : vector<1x256xf32>
      %cst_91 = arith.constant 0.000000e+00 : f32
      %400 = vector.broadcast %cst_91 : f32 to vector<1x256xf32>
      %c5_92 = arith.constant 5 : index
      %401 = memref.load %arg5[%c5_92] : memref<98xf32, #tpu.memory_space<smem>>
      %402 = vector.broadcast %401 : f32 to vector<1x256xf32>
      %403 = arith.mulf %25, %402 : vector<1x256xf32>
      %404 = arith.addf %400, %403 : vector<1x256xf32>
      %c54 = arith.constant 54 : index
      %405 = memref.load %arg5[%c54] : memref<98xf32, #tpu.memory_space<smem>>
      %406 = vector.broadcast %405 : f32 to vector<1x256xf32>
      %407 = arith.mulf %27, %406 : vector<1x256xf32>
      %408 = arith.addf %404, %407 : vector<1x256xf32>
      %c12 = arith.constant 12 : index
      %409 = memref.load %arg5[%c12] : memref<98xf32, #tpu.memory_space<smem>>
      %410 = vector.broadcast %409 : f32 to vector<1x256xf32>
      %411 = arith.mulf %34, %410 : vector<1x256xf32>
      %412 = arith.addf %408, %411 : vector<1x256xf32>
      %c61 = arith.constant 61 : index
      %413 = memref.load %arg5[%c61] : memref<98xf32, #tpu.memory_space<smem>>
      %414 = vector.broadcast %413 : f32 to vector<1x256xf32>
      %415 = arith.mulf %36, %414 : vector<1x256xf32>
      %416 = arith.addf %412, %415 : vector<1x256xf32>
      %c19 = arith.constant 19 : index
      %417 = memref.load %arg5[%c19] : memref<98xf32, #tpu.memory_space<smem>>
      %418 = vector.broadcast %417 : f32 to vector<1x256xf32>
      %419 = arith.mulf %43, %418 : vector<1x256xf32>
      %420 = arith.addf %416, %419 : vector<1x256xf32>
      %c68 = arith.constant 68 : index
      %421 = memref.load %arg5[%c68] : memref<98xf32, #tpu.memory_space<smem>>
      %422 = vector.broadcast %421 : f32 to vector<1x256xf32>
      %423 = arith.mulf %45, %422 : vector<1x256xf32>
      %424 = arith.addf %420, %423 : vector<1x256xf32>
      %c26 = arith.constant 26 : index
      %425 = memref.load %arg5[%c26] : memref<98xf32, #tpu.memory_space<smem>>
      %426 = vector.broadcast %425 : f32 to vector<1x256xf32>
      %427 = arith.mulf %50, %426 : vector<1x256xf32>
      %428 = arith.addf %424, %427 : vector<1x256xf32>
      %c75 = arith.constant 75 : index
      %429 = memref.load %arg5[%c75] : memref<98xf32, #tpu.memory_space<smem>>
      %430 = vector.broadcast %429 : f32 to vector<1x256xf32>
      %431 = arith.mulf %52, %430 : vector<1x256xf32>
      %432 = arith.addf %428, %431 : vector<1x256xf32>
      %c33 = arith.constant 33 : index
      %433 = memref.load %arg5[%c33] : memref<98xf32, #tpu.memory_space<smem>>
      %434 = vector.broadcast %433 : f32 to vector<1x256xf32>
      %435 = arith.mulf %59, %434 : vector<1x256xf32>
      %436 = arith.addf %432, %435 : vector<1x256xf32>
      %c82 = arith.constant 82 : index
      %437 = memref.load %arg5[%c82] : memref<98xf32, #tpu.memory_space<smem>>
      %438 = vector.broadcast %437 : f32 to vector<1x256xf32>
      %439 = arith.mulf %61, %438 : vector<1x256xf32>
      %440 = arith.addf %436, %439 : vector<1x256xf32>
      %c40 = arith.constant 40 : index
      %441 = memref.load %arg5[%c40] : memref<98xf32, #tpu.memory_space<smem>>
      %442 = vector.broadcast %441 : f32 to vector<1x256xf32>
      %443 = arith.mulf %68, %442 : vector<1x256xf32>
      %444 = arith.addf %440, %443 : vector<1x256xf32>
      %c89 = arith.constant 89 : index
      %445 = memref.load %arg5[%c89] : memref<98xf32, #tpu.memory_space<smem>>
      %446 = vector.broadcast %445 : f32 to vector<1x256xf32>
      %447 = arith.mulf %70, %446 : vector<1x256xf32>
      %448 = arith.addf %444, %447 : vector<1x256xf32>
      %c47 = arith.constant 47 : index
      %449 = memref.load %arg5[%c47] : memref<98xf32, #tpu.memory_space<smem>>
      %450 = vector.broadcast %449 : f32 to vector<1x256xf32>
      %451 = arith.mulf %77, %450 : vector<1x256xf32>
      %452 = arith.addf %448, %451 : vector<1x256xf32>
      %c96 = arith.constant 96 : index
      %453 = memref.load %arg5[%c96] : memref<98xf32, #tpu.memory_space<smem>>
      %454 = vector.broadcast %453 : f32 to vector<1x256xf32>
      %455 = arith.mulf %79, %454 : vector<1x256xf32>
      %456 = arith.addf %452, %455 : vector<1x256xf32>
      %c254_i32 = arith.constant 254 : i32
      %457 = tpu.dynamic_rotate %456 by %c254_i32 dim 1 : vector<1x256xf32>, i32 -> vector<1x256xf32>
      %c5_93 = arith.constant 5 : index
      %c0_94 = arith.constant 0 : index
      %458 = vector.load %arg4[%c5_93, %c0_94] : memref<7x256xi32, #tpu.memory_space<vmem>>, vector<1x256xi32>
      %c0_i32_95 = arith.constant 0 : i32
      %459 = vector.broadcast %c0_i32_95 : i32 to vector<1x256xi32>
      %460 = arith.cmpi ne, %458, %459 : vector<1x256xi32>
      %cst_96 = arith.constant 0.000000e+00 : f32
      %461 = vector.broadcast %cst_96 : f32 to vector<1x256xf32>
      %462 = arith.select %460, %457, %461 : vector<1x256xi1>, vector<1x256xf32>
      %463 = arith.addf %399, %462 : vector<1x256xf32>
      %cst_97 = arith.constant 0.000000e+00 : f32
      %464 = vector.broadcast %cst_97 : f32 to vector<1x256xf32>
      %c6_98 = arith.constant 6 : index
      %465 = memref.load %arg5[%c6_98] : memref<98xf32, #tpu.memory_space<smem>>
      %466 = vector.broadcast %465 : f32 to vector<1x256xf32>
      %467 = arith.mulf %25, %466 : vector<1x256xf32>
      %468 = arith.addf %464, %467 : vector<1x256xf32>
      %c55 = arith.constant 55 : index
      %469 = memref.load %arg5[%c55] : memref<98xf32, #tpu.memory_space<smem>>
      %470 = vector.broadcast %469 : f32 to vector<1x256xf32>
      %471 = arith.mulf %27, %470 : vector<1x256xf32>
      %472 = arith.addf %468, %471 : vector<1x256xf32>
      %c13 = arith.constant 13 : index
      %473 = memref.load %arg5[%c13] : memref<98xf32, #tpu.memory_space<smem>>
      %474 = vector.broadcast %473 : f32 to vector<1x256xf32>
      %475 = arith.mulf %34, %474 : vector<1x256xf32>
      %476 = arith.addf %472, %475 : vector<1x256xf32>
      %c62 = arith.constant 62 : index
      %477 = memref.load %arg5[%c62] : memref<98xf32, #tpu.memory_space<smem>>
      %478 = vector.broadcast %477 : f32 to vector<1x256xf32>
      %479 = arith.mulf %36, %478 : vector<1x256xf32>
      %480 = arith.addf %476, %479 : vector<1x256xf32>
      %c20 = arith.constant 20 : index
      %481 = memref.load %arg5[%c20] : memref<98xf32, #tpu.memory_space<smem>>
      %482 = vector.broadcast %481 : f32 to vector<1x256xf32>
      %483 = arith.mulf %43, %482 : vector<1x256xf32>
      %484 = arith.addf %480, %483 : vector<1x256xf32>
      %c69 = arith.constant 69 : index
      %485 = memref.load %arg5[%c69] : memref<98xf32, #tpu.memory_space<smem>>
      %486 = vector.broadcast %485 : f32 to vector<1x256xf32>
      %487 = arith.mulf %45, %486 : vector<1x256xf32>
      %488 = arith.addf %484, %487 : vector<1x256xf32>
      %c27 = arith.constant 27 : index
      %489 = memref.load %arg5[%c27] : memref<98xf32, #tpu.memory_space<smem>>
      %490 = vector.broadcast %489 : f32 to vector<1x256xf32>
      %491 = arith.mulf %50, %490 : vector<1x256xf32>
      %492 = arith.addf %488, %491 : vector<1x256xf32>
      %c76 = arith.constant 76 : index
      %493 = memref.load %arg5[%c76] : memref<98xf32, #tpu.memory_space<smem>>
      %494 = vector.broadcast %493 : f32 to vector<1x256xf32>
      %495 = arith.mulf %52, %494 : vector<1x256xf32>
      %496 = arith.addf %492, %495 : vector<1x256xf32>
      %c34 = arith.constant 34 : index
      %497 = memref.load %arg5[%c34] : memref<98xf32, #tpu.memory_space<smem>>
      %498 = vector.broadcast %497 : f32 to vector<1x256xf32>
      %499 = arith.mulf %59, %498 : vector<1x256xf32>
      %500 = arith.addf %496, %499 : vector<1x256xf32>
      %c83 = arith.constant 83 : index
      %501 = memref.load %arg5[%c83] : memref<98xf32, #tpu.memory_space<smem>>
      %502 = vector.broadcast %501 : f32 to vector<1x256xf32>
      %503 = arith.mulf %61, %502 : vector<1x256xf32>
      %504 = arith.addf %500, %503 : vector<1x256xf32>
      %c41 = arith.constant 41 : index
      %505 = memref.load %arg5[%c41] : memref<98xf32, #tpu.memory_space<smem>>
      %506 = vector.broadcast %505 : f32 to vector<1x256xf32>
      %507 = arith.mulf %68, %506 : vector<1x256xf32>
      %508 = arith.addf %504, %507 : vector<1x256xf32>
      %c90 = arith.constant 90 : index
      %509 = memref.load %arg5[%c90] : memref<98xf32, #tpu.memory_space<smem>>
      %510 = vector.broadcast %509 : f32 to vector<1x256xf32>
      %511 = arith.mulf %70, %510 : vector<1x256xf32>
      %512 = arith.addf %508, %511 : vector<1x256xf32>
      %c48 = arith.constant 48 : index
      %513 = memref.load %arg5[%c48] : memref<98xf32, #tpu.memory_space<smem>>
      %514 = vector.broadcast %513 : f32 to vector<1x256xf32>
      %515 = arith.mulf %77, %514 : vector<1x256xf32>
      %516 = arith.addf %512, %515 : vector<1x256xf32>
      %c97 = arith.constant 97 : index
      %517 = memref.load %arg5[%c97] : memref<98xf32, #tpu.memory_space<smem>>
      %518 = vector.broadcast %517 : f32 to vector<1x256xf32>
      %519 = arith.mulf %79, %518 : vector<1x256xf32>
      %520 = arith.addf %516, %519 : vector<1x256xf32>
      %c253_i32 = arith.constant 253 : i32
      %521 = tpu.dynamic_rotate %520 by %c253_i32 dim 1 : vector<1x256xf32>, i32 -> vector<1x256xf32>
      %c6_99 = arith.constant 6 : index
      %c0_100 = arith.constant 0 : index
      %522 = vector.load %arg4[%c6_99, %c0_100] : memref<7x256xi32, #tpu.memory_space<vmem>>, vector<1x256xi32>
      %c0_i32_101 = arith.constant 0 : i32
      %523 = vector.broadcast %c0_i32_101 : i32 to vector<1x256xi32>
      %524 = arith.cmpi ne, %522, %523 : vector<1x256xi32>
      %cst_102 = arith.constant 0.000000e+00 : f32
      %525 = vector.broadcast %cst_102 : f32 to vector<1x256xf32>
      %526 = arith.select %524, %521, %525 : vector<1x256xi1>, vector<1x256xf32>
      %527 = arith.addf %463, %526 : vector<1x256xf32>
      %528 = arith.negf %527 : vector<1x256xf32>
      %529 = math.exp %528 : vector<1x256xf32>
      %cst_103 = arith.constant 1.000000e+00 : f32
      %530 = vector.broadcast %cst_103 : f32 to vector<1x256xf32>
      %531 = arith.addf %530, %529 : vector<1x256xf32>
      %532 = arith.divf %530, %531 : vector<1x256xf32>
      %533 = vector.shape_cast %532 : vector<1x256xf32> to vector<1x1x256xf32>
      %c0_104 = arith.constant 0 : index
      %c0_105 = arith.constant 0 : index
      %c0_106 = arith.constant 0 : index
      %534 = vector.load %arg6[%c0_104, %c0_105, %c0_106] : memref<1x1x256xf32, #tpu.memory_space<vmem>>, vector<1x1x256xf32>
      tpu.vector_store %arg6[%c0_104, %c0_105, %c0_106], %533 {strides = array<i32>} : memref<1x1x256xf32, #tpu.memory_space<vmem>>, vector<1x1x256xf32>,
    } else {
    }
    return
  }
  func.func @transform_0(%arg0: i32, %arg1: i32) -> (i32, i32, i32) {
    %c0_i32 = arith.constant 0 : i32
    %c0_i32_0 = arith.constant 0 : i32
    return %arg0, %arg1, %c0_i32 : i32, i32, i32
  }
  func.func @transform_1(%arg0: i32, %arg1: i32) -> (i32, i32) {
    %c0_i32 = arith.constant 0 : i32
    %c0_i32_0 = arith.constant 0 : i32
    %c0_i32_1 = arith.constant 0 : i32
    return %c0_i32, %c0_i32_0 : i32, i32
  }
  func.func @transform_2(%arg0: i32, %arg1: i32) -> (i32, i32) {
    %c0_i32 = arith.constant 0 : i32
    %c0_i32_0 = arith.constant 0 : i32
    %c0_i32_1 = arith.constant 0 : i32
    return %c0_i32, %c0_i32_0 : i32, i32
  }
  func.func @transform_3(%arg0: i32, %arg1: i32) -> i32 {
    %c0_i32 = arith.constant 0 : i32
    %c0_i32_0 = arith.constant 0 : i32
    return %c0_i32 : i32
  }
  func.func @transform_4(%arg0: i32, %arg1: i32) -> (i32, i32, i32) {
    %c0_i32 = arith.constant 0 : i32
    %c0_i32_0 = arith.constant 0 : i32
    %c0_i32_1 = arith.constant 0 : i32
    return %arg0, %c0_i32, %c0_i32_0 : i32, i32, i32
  }
}

</mosaic_0001>

<llo_original>
// kernel: tpu_custom_call.1
$region0: #{tpu_custom_call.1}
  #allocation0 [shape = 'u32[]', space=smem, size = 0x4, offset = 0x4, fixed_abs, tag = 'smem constant byte address 0x4 - core index']
  #allocation1 [shape = 'u32[144,128]{1,0:T(1,128)}', space=vmem, size = 0x12000, scoped, tag = 'internal scratch']
  #allocation2 [shape = 'f32[1,8,256]{2,1,0:T(8,128)}', space=vmem, size = 0x2000, scoped, tag = 'scratch operand']
  #allocation3 [shape = 'f32[1,8,256]{2,1,0:T(8,128)}', space=vmem, size = 0x2000, scoped, tag = 'scratch operand']
  %s0 = inlined_call_operand.hbm [shape: f32[2,4,256], index: 0, kind: input, shape index: {}]
  %s1 = inlined_call_operand.hbm [shape: s32[7,256], index: 1, kind: input, shape index: {}]
  %s2 = inlined_call_operand.hbm [shape: s32[7,256], index: 2, kind: input, shape index: {}]
  %s3 = inlined_call_operand.vmem [shape: f32[98], index: 3, kind: input, shape index: {}]
  %s4 = inlined_call_operand.hbm [shape: f32[2,1,256], index: 4, kind: output, shape index: {}]
  %s5 = sld [smem:[#allocation0]]
  $region73: #{tpu_custom_call.1} parent=0
    _
  %s7 = ssub.s32 1, %s5
  %s8 = scalar_select 0, %s7, %s5
  $region1: #{tpu_custom_call.1} parent=0
    #allocation4 [shape = 'u8[8192]{0}', space=vmem, size = 0x2000, scoped, tag = 'input window, operand 0']
    #allocation5 [shape = 's32[2]{0}', space=sflag, size = 0x8, scoped, tag = 'scoped memory for tpu_custom_call.1']
    #allocation6 [shape = 's32[2]{0}', space=sflag, size = 0x8, scoped, tag = 'scoped memory for tpu_custom_call.1']
    #allocation7 [shape = 's32[2]{0}', space=sflag, size = 0x8, scoped, tag = 'scoped memory for tpu_custom_call.1']
    #allocation8 [shape = 'u8[8192]{0}', space=vmem, size = 0x2000, scoped, tag = 'input window, operand 1, single buffered']
    #allocation9 [shape = 's32[1]{0}', space=sflag, size = 0x4, scoped, tag = 'scoped memory for tpu_custom_call.1']
    #allocation10 [shape = 'u8[8192]{0}', space=vmem, size = 0x2000, scoped, tag = 'input window, operand 2, single buffered']
    #allocation11 [shape = 'u8[512]{0}', space=smem, size = 0x200, scoped, tag = 'input window, operand 3, single buffered']
    #allocation12 [shape = 'u8[2048]{0}', space=vmem, size = 0x800, scoped, tag = 'output window, operand 0']
    %9 = vsyncpa [#allocation5], 0
    %s10 = scalar_lea.sflag [#allocation5], 1
    %11 = vsyncpa %s10, 0
    %12 = vsyncpa [#allocation9], 0
    %13 = vsyncpa [#allocation7], 0
    %14 = vsyncpa [#allocation6], 0
    %s15 = scalar_lea.sflag [#allocation6], 1
    %16 = vsyncpa %s15, 0
    loop: start=0, step=1, limit=4
    $region2: #{tpu_custom_call.1} parent=1 // loop_pre_header
      _
    $region3: #{tpu_custom_call.1} parent=1 // loop_header
      %s18 = sphi 0, %s22
      %p19 = scmp.ge.s32.totalorder %s18, 4
      %s25 = sphi 0, %s37
      %s26 = sphi 0, %s33
      %s27 = sphi 0, %s25
      %s28 = sphi 0, %s26
      %s29 = sphi 0, %s27
      %s30 = sphi 0, %s28
      %s42 = sphi 0, %s44
      %s45 = sphi 0, %s42
      %s46 = sphi 0, %s45
      %s62 = sphi 0, %s46
      %s66 = sphi 0, %s66
      %s68 = sphi 0, %s66
      %s69 = sphi 0, %s68
      %s83 = sphi 0, %s69
      %s87 = sphi 0, %s87
      %s89 = sphi 0, %s87
      %s90 = sphi 0, %s89
      %s104 = sphi 0, %s90
      %s108 = sphi 0, %s108
      %s110 = sphi 0, %s108
      %s111 = sphi 0, %s110
      %s125 = sphi 0, %s111
      %s131 = sphi 0, %s133
      %s134 = sphi 0, %s131
      %s135 = sphi 0, %s134
      %s151 = sphi 0, %s135
    $region4: #{tpu_custom_call.1} parent=1 // loop_header_branch
      %21 = sbr.rel (%p19) target = $region8
    $region5: #{tpu_custom_call.1} parent=1 // loop_body
      %s23 = ssub.s32 %s18, 1
      %s24 = ssub.s32 %s18, 2
      %s31 = sadd.s32 1, %s26
      %p32 = scmp.ge.s32.totalorder %s31, 1
      %s33 = scalar_select %p32, 0, %s31
      %s34 = sadd.s32 1, %s25
      %s35 = scalar_select %p32, %s34, %s25
      %p36 = scmp.ge.s32.totalorder %s35, 2
      %s37 = scalar_select %p36, 0, %s35
      %s38 = ssub.s32 %s25, %s37
      %s39 = ssub.s32 %s26, %s33
      %s40 = sor.u32 %s38, %s39
      %p41 = scmp.eq.s32.totalorder %s40, 0
      %s43 = sadd.s32 %s42, 1
      %s44 = scalar_select %p41, %s42, %s43
      %p47 = pneg %p41
      %p48 = scmp.eq.s32.totalorder %s18, 1
      %p49 = por %p47, %p48
      %p50 = scmp.ne.s32.totalorder %s42, %s45
      %p51 = scmp.eq.s32.totalorder %s18, 0
      %p52 = por %p50, %p51
      %p53 = scmp.ne.s32.totalorder %s42, %s45
      %p54 = scmp.eq.s32.totalorder %s23, 1
      %p55 = por %p53, %p54
      %p56 = scmp.ne.s32.totalorder %s45, %s46
      %p57 = scmp.eq.s32.totalorder %s23, 0
      %p58 = por %p56, %p57
      %p59 = scmp.ne.s32.totalorder %s45, %s46
      %p60 = scmp.eq.s32.totalorder %s24, 1
      %p61 = por %p59, %p60
      %p63 = scmp.ne.s32.totalorder %s46, %s62
      %p64 = scmp.eq.s32.totalorder %s24, 0
      %p65 = por %p63, %p64
      %s67 = sadd.s32 %s66, 1
      %p70 = scmp.eq.s32.totalorder %s18, 1
      %p71 = scmp.ne.s32.totalorder %s66, %s68
      %p72 = scmp.eq.s32.totalorder %s18, 0
      %p73 = por %p71, %p72
      %p74 = scmp.ne.s32.totalorder %s66, %s68
      %p75 = scmp.eq.s32.totalorder %s23, 1
      %p76 = por %p74, %p75
      %p77 = scmp.ne.s32.totalorder %s68, %s69
      %p78 = scmp.eq.s32.totalorder %s23, 0
      %p79 = por %p77, %p78
      %p80 = scmp.ne.s32.totalorder %s68, %s69
      %p81 = scmp.eq.s32.totalorder %s24, 1
      %p82 = por %p80, %p81
      %p84 = scmp.ne.s32.totalorder %s69, %s83
      %p85 = scmp.eq.s32.totalorder %s24, 0
      %p86 = por %p84, %p85
      %s88 = sadd.s32 %s87, 1
      %p91 = scmp.eq.s32.totalorder %s18, 1
      %p92 = scmp.ne.s32.totalorder %s87, %s89
      %p93 = scmp.eq.s32.totalorder %s18, 0
      %p94 = por %p92, %p93
      %p95 = scmp.ne.s32.totalorder %s87, %s89
      %p96 = scmp.eq.s32.totalorder %s23, 1
      %p97 = por %p95, %p96
      %p98 = scmp.ne.s32.totalorder %s89, %s90
      %p99 = scmp.eq.s32.totalorder %s23, 0
      %p100 = por %p98, %p99
      %p101 = scmp.ne.s32.totalorder %s89, %s90
      %p102 = scmp.eq.s32.totalorder %s24, 1
      %p103 = por %p101, %p102
      %p105 = scmp.ne.s32.totalorder %s90, %s104
      %p106 = scmp.eq.s32.totalorder %s24, 0
      %p107 = por %p105, %p106
      %s109 = sadd.s32 %s108, 1
      %p112 = scmp.eq.s32.totalorder %s18, 1
      %p113 = scmp.ne.s32.totalorder %s108, %s110
      %p114 = scmp.eq.s32.totalorder %s18, 0
      %p115 = por %p113, %p114
      %p116 = scmp.ne.s32.totalorder %s108, %s110
      %p117 = scmp.eq.s32.totalorder %s23, 1
      %p118 = por %p116, %p117
      %p119 = scmp.ne.s32.totalorder %s110, %s111
      %p120 = scmp.eq.s32.totalorder %s23, 0
      %p121 = por %p119, %p120
      %p122 = scmp.ne.s32.totalorder %s110, %s111
      %p123 = scmp.eq.s32.totalorder %s24, 1
      %p124 = por %p122, %p123
      %p126 = scmp.ne.s32.totalorder %s111, %s125
      %p127 = scmp.eq.s32.totalorder %s24, 0
      %p128 = por %p126, %p127
      %s129 = ssub.s32 %s25, %s37
      %p130 = scmp.eq.s32.totalorder %s129, 0
      %s132 = sadd.s32 %s131, 1
      %s133 = scalar_select %p130, %s131, %s132
      %p136 = pneg %p130
      %p137 = scmp.eq.s32.totalorder %s18, 1
      %p138 = por %p136, %p137
      %p139 = scmp.ne.s32.totalorder %s131, %s134
      %p140 = scmp.eq.s32.totalorder %s18, 0
      %p141 = por %p139, %p140
      %p142 = scmp.ne.s32.totalorder %s131, %s134
      %p143 = scmp.eq.s32.totalorder %s23, 1
      %p144 = por %p142, %p143
      %p145 = scmp.ne.s32.totalorder %s134, %s135
      %p146 = scmp.eq.s32.totalorder %s23, 0
      %p147 = por %p145, %p146
      %p148 = scmp.ne.s32.totalorder %s134, %s135
      %p149 = scmp.eq.s32.totalorder %s24, 1
      %p150 = por %p148, %p149
      %p152 = scmp.ne.s32.totalorder %s135, %s151
      %p153 = scmp.eq.s32.totalorder %s24, 0
      %p154 = por %p152, %p153
      %p155 = scmp.le.s32.totalorder 1, %s18
      %p156 = scmp.lt.s32.totalorder %s18, 3
      %p157 = pnand %p155, %p156
      %p158 = pneg %p157
      // Predicated region
      $region9: #{tpu_custom_call.1} parent=5 // pred_check
        _
      $region10: #{tpu_custom_call.1} parent=5 // pred_check_branch
        %160 = sbr.rel (%p157) target = $region12
      $region11: #{tpu_custom_call.1} parent=5 // pred_region
        %s161 = ssub.s32 %s18, 1
        // Predicated region
        $region13: #{tpu_custom_call.1} parent=11 // pred_check
          %p162 = pneg %p79
        $region14: #{tpu_custom_call.1} parent=11 // pred_check_branch
          %164 = sbr.rel (%p162) target = $region16
        $region15: #{tpu_custom_call.1} parent=11 // pred_region
          %s166 = ssub.s32 256, 256
          %167 = vsyncadd [#allocation9], %s166
          %s169 = sshll.u32 [#allocation8], 4
          %s170 = int_to_ptr.vmem [resolvable:$true] %s169
          %172 = dma.hbm_to_vmem [thread:$0]  %s1, 256, %s170, [#allocation9]
        $region16: #{tpu_custom_call.1} parent=11 // pred_fallthru
          _
        // Predicated region
        $region17: #{tpu_custom_call.1} parent=11 // pred_check
          %p173 = pneg %p100
        $region18: #{tpu_custom_call.1} parent=11 // pred_check_branch
          %175 = sbr.rel (%p173) target = $region20
        $region19: #{tpu_custom_call.1} parent=11 // pred_region
          %s177 = ssub.s32 256, 256
          %178 = vsyncadd [#allocation9], %s177
          %s180 = sshll.u32 [#allocation10], 4
          %s181 = int_to_ptr.vmem [resolvable:$true] %s180
          %183 = dma.hbm_to_vmem [thread:$0]  %s2, 256, %s181, [#allocation9]
        $region20: #{tpu_custom_call.1} parent=11 // pred_fallthru
          _
        // Predicated region
        $region21: #{tpu_custom_call.1} parent=11 // pred_check
          %p184 = pneg %p121
        $region22: #{tpu_custom_call.1} parent=11 // pred_check_branch
          %186 = sbr.rel (%p184) target = $region24
        $region23: #{tpu_custom_call.1} parent=11 // pred_region
          %s188 = ssub.s32 16, 16
          %189 = vsyncadd [#allocation7], %s188
          %s191 = sshll.u32 %s3, 4
          %s192 = int_to_ptr.vmem [resolvable:$true] %s191
          %194 = dma.vmem_to_smem %s192, 16, [#allocation11], [#allocation7]
        $region24: #{tpu_custom_call.1} parent=11 // pred_fallthru
          _
      $region12: #{tpu_custom_call.1} parent=5 // pred_fallthru
        _
      %p195 = scmp.lt.s32.totalorder %s18, 2
      // Predicated region
      $region25: #{tpu_custom_call.1} parent=5 // pred_check
        %p196 = pneg %p195
      $region26: #{tpu_custom_call.1} parent=5 // pred_check_branch
        %198 = sbr.rel (%p196) target = $region28
      $region27: #{tpu_custom_call.1} parent=5 // pred_region
        // Predicated region
        $region29: #{tpu_custom_call.1} parent=27 // pred_check
          %p199 = pneg %p52
        $region30: #{tpu_custom_call.1} parent=27 // pred_check_branch
          %201 = sbr.rel (%p199) target = $region32
        $region31: #{tpu_custom_call.1} parent=27 // pred_region
          %s202 = sand.u32 %s42, 1
          %s203 = scalar_lea.sflag [#allocation5], %s202
          %s204 = sand.u32 %s42, 1
          %s205 = smul.addr %s204, 8
          %s206 = scalar_lea.vmem [#allocation4], %s205
          %s208 = ssub.s32 128, 128
          %209 = vsyncadd %s203, %s208
          %s210 = smul.addr %s26, 2
          %s211 = smul.addr %s25, 2
          %s212 = sadd.s32 %s210, %s211
          %s213 = smul.addr %s212, 64
          %s214 = scalar_lea.hbm %s0, %s213
          %s216 = sshll.u32 %s206, 4
          %s217 = int_to_ptr.vmem [resolvable:$true] %s216
          %219 = dma.hbm_to_vmem [thread:$0]  %s214, 128, %s217, %s203
        $region32: #{tpu_custom_call.1} parent=27 // pred_fallthru
          _
      $region28: #{tpu_custom_call.1} parent=5 // pred_fallthru
        _
      %p220 = scmp.le.s32.totalorder 1, %s18
      %p221 = scmp.lt.s32.totalorder %s18, 3
      %p222 = pnand %p220, %p221
      %p223 = pneg %p222
      // Predicated region
      $region33: #{tpu_custom_call.1} parent=5 // pred_check
        _
      $region34: #{tpu_custom_call.1} parent=5 // pred_check_branch
        %225 = sbr.rel (%p222) target = $region36
      $region35: #{tpu_custom_call.1} parent=5 // pred_region
        %s226 = ssub.s32 %s18, 1
        %s227 = sand.u32 %s45, 1
        %s228 = scalar_lea.sflag [#allocation5], %s227
        %s229 = sand.u32 %s45, 1
        %s230 = smul.addr %s229, 8
        %s231 = scalar_lea.vmem [#allocation4], %s230
        // Predicated region
        $region37: #{tpu_custom_call.1} parent=35 // pred_check
          %p232 = pneg %p58
        $region38: #{tpu_custom_call.1} parent=35 // pred_check_branch
          %234 = sbr.rel (%p232) target = $region40
        $region39: #{tpu_custom_call.1} parent=35 // pred_region
          %235 = dma.done %s228, 128
        $region40: #{tpu_custom_call.1} parent=35 // pred_fallthru
          _
        // Predicated region
        $region41: #{tpu_custom_call.1} parent=35 // pred_check
          %p236 = pneg %p79
        $region42: #{tpu_custom_call.1} parent=35 // pred_check_branch
          %238 = sbr.rel (%p236) target = $region44
        $region43: #{tpu_custom_call.1} parent=35 // pred_region
          %239 = dma.done [#allocation9], 256
        $region44: #{tpu_custom_call.1} parent=35 // pred_fallthru
          _
        // Predicated region
        $region45: #{tpu_custom_call.1} parent=35 // pred_check
          %p240 = pneg %p100
        $region46: #{tpu_custom_call.1} parent=35 // pred_check_branch
          %242 = sbr.rel (%p240) target = $region48
        $region47: #{tpu_custom_call.1} parent=35 // pred_region
          %243 = dma.done [#allocation9], 256
        $region48: #{tpu_custom_call.1} parent=35 // pred_fallthru
          _
        // Predicated region
        $region49: #{tpu_custom_call.1} parent=35 // pred_check
          %p244 = pneg %p121
        $region50: #{tpu_custom_call.1} parent=35 // pred_check_branch
          %246 = sbr.rel (%p244) target = $region52
        $region51: #{tpu_custom_call.1} parent=35 // pred_region
          %247 = dma.done [#allocation7], 16
        $region52: #{tpu_custom_call.1} parent=35 // pred_fallthru
          _
        %248 = sfence
        %s249 = sand.u32 %s45, 1
        %s250 = scalar_lea.sflag [#allocation5], %s249
        %s251 = sand.u32 %s45, 1
        %s252 = smul.addr %s251, 8
        %s253 = scalar_lea.vmem [#allocation4], %s252
        %p254 = pneg %p58
        %p255 = pneg %p55
        %p256 = pneg %p79
        %p257 = pneg %p76
        %p258 = pneg %p100
        %p259 = pneg %p97
        %p260 = pneg %p121
        %p261 = pneg %p118
        %p262 = pneg %p147
        %p263 = pneg %p144
        %s264 = sand.u32 %s134, 1
        %s265 = scalar_lea.sflag [#allocation6], %s264
        %s266 = sand.u32 %s134, 1
        %s267 = smul.addr %s266, 2
        %s268 = scalar_lea.vmem [#allocation12], %s267
        %p269 = scmp.eq.s32.totalorder %s28, 0
        // Predicated region
        $region53: #{tpu_custom_call.1} parent=35 // pred_check
          %p270 = pneg %p269
        $region54: #{tpu_custom_call.1} parent=35 // pred_check_branch
          %272 = sbr.rel (%p270) target = $region56
        $region55: #{tpu_custom_call.1} parent=35 // pred_region
          %273 = vst [vmem:[#allocation2] sm:$0xff] 0.0
          %274 = vst [vmem:[#allocation2 + $0x8] sm:$0xff] 0.0
          %275 = vst [vmem:[#allocation3] sm:$0xff] -inf
          %276 = vst [vmem:[#allocation3 + $0x8] sm:$0xff] -inf
        $region56: #{tpu_custom_call.1} parent=35 // pred_fallthru
          _
        %v277 = vld [vmem:[%s231] sm:$0xff]
        %v278 = vld [vmem:[#allocation2] sm:$0xf]
        %v279 = vld [vmem:[#allocation2 + $0x8] sm:$0xf]
        %v281 = vcombine.high %v277, %v277
        %v283 = vadd.f32 %v278, %v277
        %v284 = vadd.f32 %v279, %v281
        %285 = vst [vmem:[#allocation2] sm:$0xf] %v283
        %286 = vst [vmem:[#allocation2 + $0x8] sm:$0xf] %v284
        %v287 = vld [vmem:[#allocation3] sm:$0xf]
        %v288 = vld [vmem:[#allocation3 + $0x8] sm:$0xf]
        %v289 = vmax.f32 %v287, %v277
        %v290 = vmax.f32 %v288, %v281
        %291 = vst [vmem:[#allocation3] sm:$0xf] %v289
        %292 = vst [vmem:[#allocation3 + $0x8] sm:$0xf] %v290
        // Predicated region
        $region57: #{tpu_custom_call.1} parent=35 // pred_check
          %p293 = pneg %p269
        $region58: #{tpu_custom_call.1} parent=35 // pred_check_branch
          %295 = sbr.rel (%p293) target = $region60
        $region59: #{tpu_custom_call.1} parent=35 // pred_region
          %v296 = vld [vmem:[#allocation2] sm:$0xff]
          %v297 = vld [vmem:[#allocation2 + $0x8] sm:$0xff]
          %v298 = vrot.slane %v296, 4
          %v299 = vadd.f32 %v296, %v298
          %v300 = vrot.slane %v299, 2
          %v301 = vadd.f32 %v299, %v300
          %v302 = vrot.slane %v301, 1
          %v303 = vadd.f32 %v301, %v302
          %v304 = vrot.slane %v297, 4
          %v305 = vadd.f32 %v297, %v304
          %v306 = vrot.slane %v305, 2
          %v307 = vadd.f32 %v305, %v306
          %v308 = vrot.slane %v307, 1
          %v309 = vadd.f32 %v307, %v308
          %v310 = vmul.f32 %v303, 0.25
          %v311 = vmul.f32 %v309, 0.25
          %v312 = vld [vmem:[#allocation3] sm:$0xff]
          %v313 = vld [vmem:[#allocation3 + $0x8] sm:$0xff]
          %v314 = vrot.slane %v312, 4
          %v315 = vmax.f32 %v312, %v314
          %v316 = vrot.slane %v315, 2
          %v317 = vmax.f32 %v315, %v316
          %v318 = vrot.slane %v317, 1
          %v319 = vmax.f32 %v317, %v318
          %v320 = vrot.slane %v313, 4
          %v321 = vmax.f32 %v313, %v320
          %v322 = vrot.slane %v321, 2
          %v323 = vmax.f32 %v321, %v322
          %v324 = vrot.slane %v323, 1
          %v325 = vmax.f32 %v323, %v324
          %v326 = vld [vmem:[#allocation8] ss:$8 sm:$0x3]
          %vm327 = vcmp.ne.s32.totalorder %v326, 0
          %328 = vrot.lane.b32.xlu0 %v310, 48
          %v329 = vpop.permute.xlu0 %328
          %330 = vrot.lane.b32.xlu0 %v311, 48
          %v331 = vpop.permute.xlu0 %330
          %v332 = vlaneseq
          %v333 = vand.u32 %v332, 127
          %vm334 = vcmp.lt.s32.totalorder %v333, 48
          %v335 = vsel %vm334, %v329, %v331
          %v336 = vsel %vm334, %v331, %v329
          %337 = vrot.lane.b32.xlu0 %v319, 48
          %v338 = vpop.permute.xlu0 %337
          %339 = vrot.lane.b32.xlu0 %v325, 48
          %v340 = vpop.permute.xlu0 %339
          %v341 = vsel %vm334, %v338, %v340
          %v342 = vsel %vm334, %v340, %v338
          %v345 = vcombine.low %v336, %v335
          %v347 = vunpack.c.l.s4 1966171168
          %v348 = vunpack.c.0.s8 %v347
          %v349 = vlaneseq
          %v350 = vshrl.u32 %v349, 7
          %v351 = vsub.s32 %v348, %v350
          %v352 = vrot.slane %v345, %v351
          %v354 = vunpack.c.l.s4 1966171168
          %v355 = vunpack.c.0.s8 %v354
          %v356 = vlaneseq
          %v357 = vshrl.u32 %v356, 7
          %v358 = vsub.s32 %v355, %v357
          %v359 = vrot.slane %v352, %v358
          %v361 = vsel %vm327, %v359, 0.0
          %v364 = vcombine.low %v342, %v341
          %v366 = vunpack.c.l.s4 1966171168
          %v367 = vunpack.c.0.s8 %v366
          %v368 = vlaneseq
          %v369 = vshrl.u32 %v368, 7
          %v370 = vsub.s32 %v367, %v369
          %v371 = vrot.slane %v364, %v370
          %v373 = vunpack.c.l.s4 1966171168
          %v374 = vunpack.c.0.s8 %v373
          %v375 = vlaneseq
          %v376 = vshrl.u32 %v375, 7
          %v377 = vsub.s32 %v374, %v376
          %v378 = vrot.slane %v371, %v377
          %v380 = vsel %vm327, %v378, 0.0
          %s381 = scalar_lea.vmem [#allocation8], 1
          %v382 = vld [vmem:[%s381] ss:$8 sm:$0x3]
          %vm383 = vcmp.ne.s32.totalorder %v382, 0
          %384 = vrot.lane.b32.xlu0 %v310, 32
          %v385 = vpop.permute.xlu0 %384
          %386 = vrot.lane.b32.xlu0 %v311, 32
          %v387 = vpop.permute.xlu0 %386
          %vm388 = vcmp.lt.s32.totalorder %v333, 32
          %v389 = vsel %vm388, %v385, %v387
          %v390 = vsel %vm388, %v387, %v385
          %391 = vrot.lane.b32.xlu0 %v319, 32
          %v392 = vpop.permute.xlu0 %391
          %393 = vrot.lane.b32.xlu0 %v325, 32
          %v394 = vpop.permute.xlu0 %393
          %v395 = vsel %vm388, %v392, %v394
          %v396 = vsel %vm388, %v394, %v392
          %v399 = vcombine.low %v390, %v389
          %v401 = vunpack.c.l.s4 1966171168
          %v402 = vunpack.c.0.s8 %v401
          %v403 = vlaneseq
          %v404 = vshrl.u32 %v403, 7
          %v405 = vsub.s32 %v402, %v404
          %v406 = vrot.slane %v399, %v405
          %v408 = vunpack.c.l.s4 1966171168
          %v409 = vunpack.c.0.s8 %v408
          %v410 = vlaneseq
          %v411 = vshrl.u32 %v410, 7
          %v412 = vsub.s32 %v409, %v411
          %v413 = vrot.slane %v406, %v412
          %v415 = vsel %vm383, %v413, 0.0
          %v418 = vcombine.low %v396, %v395
          %v420 = vunpack.c.l.s4 1966171168
          %v421 = vunpack.c.0.s8 %v420
          %v422 = vlaneseq
          %v423 = vshrl.u32 %v422, 7
          %v424 = vsub.s32 %v421, %v423
          %v425 = vrot.slane %v418, %v424
          %v427 = vunpack.c.l.s4 1966171168
          %v428 = vunpack.c.0.s8 %v427
          %v429 = vlaneseq
          %v430 = vshrl.u32 %v429, 7
          %v431 = vsub.s32 %v428, %v430
          %v432 = vrot.slane %v425, %v431
          %v434 = vsel %vm383, %v432, 0.0
          %s435 = scalar_lea.vmem [#allocation8], 2
          %v436 = vld [vmem:[%s435] ss:$8 sm:$0x3]
          %vm437 = vcmp.ne.s32.totalorder %v436, 0
          %438 = vrot.lane.b32.xlu0 %v310, 16
          %v439 = vpop.permute.xlu0 %438
          %440 = vrot.lane.b32.xlu0 %v311, 16
          %v441 = vpop.permute.xlu0 %440
          %vm442 = vcmp.lt.s32.totalorder %v333, 16
          %v443 = vsel %vm442, %v439, %v441
          %v444 = vsel %vm442, %v441, %v439
          %445 = vrot.lane.b32.xlu0 %v319, 16
          %v446 = vpop.permute.xlu0 %445
          %447 = vrot.lane.b32.xlu0 %v325, 16
          %v448 = vpop.permute.xlu0 %447
          %v449 = vsel %vm442, %v446, %v448
          %v450 = vsel %vm442, %v448, %v446
          %v453 = vcombine.low %v444, %v443
          %v455 = vunpack.c.l.s4 1966171168
          %v456 = vunpack.c.0.s8 %v455
          %v457 = vlaneseq
          %v458 = vshrl.u32 %v457, 7
          %v459 = vsub.s32 %v456, %v458
          %v460 = vrot.slane %v453, %v459
          %v462 = vunpack.c.l.s4 1966171168
          %v463 = vunpack.c.0.s8 %v462
          %v464 = vlaneseq
          %v465 = vshrl.u32 %v464, 7
          %v466 = vsub.s32 %v463, %v465
          %v467 = vrot.slane %v460, %v466
          %v469 = vsel %vm437, %v467, 0.0
          %v472 = vcombine.low %v450, %v449
          %v474 = vunpack.c.l.s4 1966171168
          %v475 = vunpack.c.0.s8 %v474
          %v476 = vlaneseq
          %v477 = vshrl.u32 %v476, 7
          %v478 = vsub.s32 %v475, %v477
          %v479 = vrot.slane %v472, %v478
          %v481 = vunpack.c.l.s4 1966171168
          %v482 = vunpack.c.0.s8 %v481
          %v483 = vlaneseq
          %v484 = vshrl.u32 %v483, 7
          %v485 = vsub.s32 %v482, %v484
          %v486 = vrot.slane %v479, %v485
          %v488 = vsel %vm437, %v486, 0.0
          %s489 = scalar_lea.vmem [#allocation8], 3
          %v490 = vld [vmem:[%s489] ss:$8 sm:$0x3]
          %vm491 = vcmp.ne.s32.totalorder %v490, 0
          %v494 = vcombine.low %v310, %v311
          %v496 = vunpack.c.l.s4 1966171168
          %v497 = vunpack.c.0.s8 %v496
          %v498 = vlaneseq
          %v499 = vshrl.u32 %v498, 7
          %v500 = vsub.s32 %v497, %v499
          %v501 = vrot.slane %v494, %v500
          %v503 = vunpack.c.l.s4 1966171168
          %v504 = vunpack.c.0.s8 %v503
          %v505 = vlaneseq
          %v506 = vshrl.u32 %v505, 7
          %v507 = vsub.s32 %v504, %v506
          %v508 = vrot.slane %v501, %v507
          %v510 = vsel %vm491, %v508, 0.0
          %v513 = vcombine.low %v319, %v325
          %v515 = vunpack.c.l.s4 1966171168
          %v516 = vunpack.c.0.s8 %v515
          %v517 = vlaneseq
          %v518 = vshrl.u32 %v517, 7
          %v519 = vsub.s32 %v516, %v518
          %v520 = vrot.slane %v513, %v519
          %v522 = vunpack.c.l.s4 1966171168
          %v523 = vunpack.c.0.s8 %v522
          %v524 = vlaneseq
          %v525 = vshrl.u32 %v524, 7
          %v526 = vsub.s32 %v523, %v525
          %v527 = vrot.slane %v520, %v526
          %v529 = vsel %vm491, %v527, 0.0
          %s530 = scalar_lea.vmem [#allocation8], 4
          %v531 = vld [vmem:[%s530] ss:$8 sm:$0x3]
          %vm532 = vcmp.ne.s32.totalorder %v531, 0
          %533 = vrot.lane.b32.xlu0 %v310, 112
          %v534 = vpop.permute.xlu0 %533
          %535 = vrot.lane.b32.xlu0 %v311, 112
          %v536 = vpop.permute.xlu0 %535
          %vm537 = vcmp.lt.s32.totalorder %v333, 112
          %v538 = vsel %vm537, %v534, %v536
          %v539 = vsel %vm537, %v536, %v534
          %540 = vrot.lane.b32.xlu0 %v319, 112
          %v541 = vpop.permute.xlu0 %540
          %542 = vrot.lane.b32.xlu0 %v325, 112
          %v543 = vpop.permute.xlu0 %542
          %v544 = vsel %vm537, %v541, %v543
          %v545 = vsel %vm537, %v543, %v541
          %v548 = vcombine.low %v538, %v539
          %v550 = vunpack.c.l.s4 1966171168
          %v551 = vunpack.c.0.s8 %v550
          %v552 = vlaneseq
          %v553 = vshrl.u32 %v552, 7
          %v554 = vsub.s32 %v551, %v553
          %v555 = vrot.slane %v548, %v554
          %v557 = vunpack.c.l.s4 1966171168
          %v558 = vunpack.c.0.s8 %v557
          %v559 = vlaneseq
          %v560 = vshrl.u32 %v559, 7
          %v561 = vsub.s32 %v558, %v560
          %v562 = vrot.slane %v555, %v561
          %v564 = vsel %vm532, %v562, 0.0
          %v567 = vcombine.low %v544, %v545
          %v569 = vunpack.c.l.s4 1966171168
          %v570 = vunpack.c.0.s8 %v569
          %v571 = vlaneseq
          %v572 = vshrl.u32 %v571, 7
          %v573 = vsub.s32 %v570, %v572
          %v574 = vrot.slane %v567, %v573
          %v576 = vunpack.c.l.s4 1966171168
          %v577 = vunpack.c.0.s8 %v576
          %v578 = vlaneseq
          %v579 = vshrl.u32 %v578, 7
          %v580 = vsub.s32 %v577, %v579
          %v581 = vrot.slane %v574, %v580
          %v583 = vsel %vm532, %v581, 0.0
          %s584 = scalar_lea.vmem [#allocation8], 5
          %v585 = vld [vmem:[%s584] ss:$8 sm:$0x3]
          %vm586 = vcmp.ne.s32.totalorder %v585, 0
          %587 = vrot.lane.b32.xlu0 %v310, 96
          %v588 = vpop.permute.xlu0 %587
          %589 = vrot.lane.b32.xlu0 %v311, 96
          %v590 = vpop.permute.xlu0 %589
          %vm591 = vcmp.lt.s32.totalorder %v333, 96
          %v592 = vsel %vm591, %v588, %v590
          %v593 = vsel %vm591, %v590, %v588
          %594 = vrot.lane.b32.xlu0 %v319, 96
          %v595 = vpop.permute.xlu0 %594
          %596 = vrot.lane.b32.xlu0 %v325, 96
          %v597 = vpop.permute.xlu0 %596
          %v598 = vsel %vm591, %v595, %v597
          %v599 = vsel %vm591, %v597, %v595
          %v602 = vcombine.low %v592, %v593
          %v604 = vunpack.c.l.s4 1966171168
          %v605 = vunpack.c.0.s8 %v604
          %v606 = vlaneseq
          %v607 = vshrl.u32 %v606, 7
          %v608 = vsub.s32 %v605, %v607
          %v609 = vrot.slane %v602, %v608
          %v611 = vunpack.c.l.s4 1966171168
          %v612 = vunpack.c.0.s8 %v611
          %v613 = vlaneseq
          %v614 = vshrl.u32 %v613, 7
          %v615 = vsub.s32 %v612, %v614
          %v616 = vrot.slane %v609, %v615
          %v618 = vsel %vm586, %v616, 0.0
          %v621 = vcombine.low %v598, %v599
          %v623 = vunpack.c.l.s4 1966171168
          %v624 = vunpack.c.0.s8 %v623
          %v625 = vlaneseq
          %v626 = vshrl.u32 %v625, 7
          %v627 = vsub.s32 %v624, %v626
          %v628 = vrot.slane %v621, %v627
          %v630 = vunpack.c.l.s4 1966171168
          %v631 = vunpack.c.0.s8 %v630
          %v632 = vlaneseq
          %v633 = vshrl.u32 %v632, 7
          %v634 = vsub.s32 %v631, %v633
          %v635 = vrot.slane %v628, %v634
          %v637 = vsel %vm586, %v635, 0.0
          %s638 = scalar_lea.vmem [#allocation8], 6
          %v639 = vld [vmem:[%s638] ss:$8 sm:$0x3]
          %vm640 = vcmp.ne.s32.totalorder %v639, 0
          %641 = vrot.lane.b32.xlu0 %v310, 80
          %v642 = vpop.permute.xlu0 %641
          %643 = vrot.lane.b32.xlu0 %v311, 80
          %v644 = vpop.permute.xlu0 %643
          %vm645 = vcmp.lt.s32.totalorder %v333, 80
          %v646 = vsel %vm645, %v642, %v644
          %v647 = vsel %vm645, %v644, %v642
          %648 = vrot.lane.b32.xlu0 %v319, 80
          %v649 = vpop.permute.xlu0 %648
          %650 = vrot.lane.b32.xlu0 %v325, 80
          %v651 = vpop.permute.xlu0 %650
          %v652 = vsel %vm645, %v649, %v651
          %v653 = vsel %vm645, %v651, %v649
          %v656 = vcombine.low %v646, %v647
          %v658 = vunpack.c.l.s4 1966171168
          %v659 = vunpack.c.0.s8 %v658
          %v660 = vlaneseq
          %v661 = vshrl.u32 %v660, 7
          %v662 = vsub.s32 %v659, %v661
          %v663 = vrot.slane %v656, %v662
          %v665 = vunpack.c.l.s4 1966171168
          %v666 = vunpack.c.0.s8 %v665
          %v667 = vlaneseq
          %v668 = vshrl.u32 %v667, 7
          %v669 = vsub.s32 %v666, %v668
          %v670 = vrot.slane %v663, %v669
          %v672 = vsel %vm640, %v670, 0.0
          %v675 = vcombine.low %v652, %v653
          %v677 = vunpack.c.l.s4 1966171168
          %v678 = vunpack.c.0.s8 %v677
          %v679 = vlaneseq
          %v680 = vshrl.u32 %v679, 7
          %v681 = vsub.s32 %v678, %v680
          %v682 = vrot.slane %v675, %v681
          %v684 = vunpack.c.l.s4 1966171168
          %v685 = vunpack.c.0.s8 %v684
          %v686 = vlaneseq
          %v687 = vshrl.u32 %v686, 7
          %v688 = vsub.s32 %v685, %v687
          %v689 = vrot.slane %v682, %v688
          %v691 = vsel %vm640, %v689, 0.0
          %s692 = sld [smem:[#allocation11]]
          %v693 = vstv %s692
          %v694 = vmul.f32 %v361, %v693
          %v695 = vadd.f32 %v694, 0.0
          %s696 = sld [smem:[#allocation11 + $0x31]]
          %v697 = vstv %s696
          %v698 = vmul.f32 %v380, %v697
          %v699 = vadd.f32 %v695, %v698
          %s700 = sld [smem:[#allocation11 + $0x7]]
          %v701 = vstv %s700
          %v702 = vmul.f32 %v415, %v701
          %v703 = vadd.f32 %v699, %v702
          %s704 = sld [smem:[#allocation11 + $0x38]]
          %v705 = vstv %s704
          %v706 = vmul.f32 %v434, %v705
          %v707 = vadd.f32 %v703, %v706
          %s708 = sld [smem:[#allocation11 + $0xe]]
          %v709 = vstv %s708
          %v710 = vmul.f32 %v469, %v709
          %v711 = vadd.f32 %v707, %v710
          %s712 = sld [smem:[#allocation11 + $0x3f]]
          %v713 = vstv %s712
          %v714 = vmul.f32 %v488, %v713
          %v715 = vadd.f32 %v711, %v714
          %s716 = sld [smem:[#allocation11 + $0x15]]
          %v717 = vstv %s716
          %v718 = vmul.f32 %v510, %v717
          %v719 = vadd.f32 %v715, %v718
          %s720 = sld [smem:[#allocation11 + $0x46]]
          %v721 = vstv %s720
          %v722 = vmul.f32 %v529, %v721
          %v723 = vadd.f32 %v719, %v722
          %s724 = sld [smem:[#allocation11 + $0x1c]]
          %v725 = vstv %s724
          %v726 = vmul.f32 %v564, %v725
          %v727 = vadd.f32 %v723, %v726
          %s728 = sld [smem:[#allocation11 + $0x4d]]
          %v729 = vstv %s728
          %v730 = vmul.f32 %v583, %v729
          %v731 = vadd.f32 %v727, %v730
          %s732 = sld [smem:[#allocation11 + $0x23]]
          %v733 = vstv %s732
          %v734 = vmul.f32 %v618, %v733
          %v735 = vadd.f32 %v731, %v734
          %s736 = sld [smem:[#allocation11 + $0x54]]
          %v737 = vstv %s736
          %v738 = vmul.f32 %v637, %v737
          %v739 = vadd.f32 %v735, %v738
          %s740 = sld [smem:[#allocation11 + $0x2a]]
          %v741 = vstv %s740
          %v742 = vmul.f32 %v672, %v741
          %v743 = vadd.f32 %v739, %v742
          %s744 = sld [smem:[#allocation11 + $0x5b]]
          %v745 = vstv %s744
          %v746 = vmul.f32 %v691, %v745
          %v747 = vadd.f32 %v743, %v746
          %v749 = vlaneseq
          %v750 = vshrl.u32 %v749, 7
          %v751 = vsub.s32 0, %v750
          %v752 = vrot.slane %v747, %v751
          %v753 = vlaneseq
          %v754 = vshrl.u32 %v753, 7
          %v755 = vsub.s32 1, %v754
          %v756 = vrot.slane %v747, %v755
          %759 = vrot.lane.b32.xlu0 %v752, 3
          %v760 = vpop.permute.xlu0 %759
          %761 = vrot.lane.b32.xlu0 %v756, 3
          %v762 = vpop.permute.xlu0 %761
          %vm763 = vcmp.lt.s32.totalorder %v333, 3
          %v764 = vsel %vm763, %v760, %v762
          %v765 = vsel %vm763, %v762, %v760
          %v766 = vld [vmem:[#allocation10] ss:$8 sm:$0x3]
          %vm767 = vcmp.ne.s32.totalorder %v766, 0
          %v770 = vcombine.low %v765, %v764
          %v772 = vunpack.c.l.s4 1966171168
          %v773 = vunpack.c.0.s8 %v772
          %v774 = vlaneseq
          %v775 = vshrl.u32 %v774, 7
          %v776 = vsub.s32 %v773, %v775
          %v777 = vrot.slane %v770, %v776
          %v779 = vunpack.c.l.s4 1966171168
          %v780 = vunpack.c.0.s8 %v779
          %v781 = vlaneseq
          %v782 = vshrl.u32 %v781, 7
          %v783 = vsub.s32 %v780, %v782
          %v784 = vrot.slane %v777, %v783
          %v786 = vsel %vm767, %v784, 0.0
          %v787 = vadd.f32 %v786, 0.0
          %s788 = sld [smem:[#allocation11 + $0x1]]
          %v789 = vstv %s788
          %v790 = vmul.f32 %v361, %v789
          %v791 = vadd.f32 %v790, 0.0
          %s792 = sld [smem:[#allocation11 + $0x32]]
          %v793 = vstv %s792
          %v794 = vmul.f32 %v380, %v793
          %v795 = vadd.f32 %v791, %v794
          %s796 = sld [smem:[#allocation11 + $0x8]]
          %v797 = vstv %s796
          %v798 = vmul.f32 %v415, %v797
          %v799 = vadd.f32 %v795, %v798
          %s800 = sld [smem:[#allocation11 + $0x39]]
          %v801 = vstv %s800
          %v802 = vmul.f32 %v434, %v801
          %v803 = vadd.f32 %v799, %v802
          %s804 = sld [smem:[#allocation11 + $0xf]]
          %v805 = vstv %s804
          %v806 = vmul.f32 %v469, %v805
          %v807 = vadd.f32 %v803, %v806
          %s808 = sld [smem:[#allocation11 + $0x40]]
          %v809 = vstv %s808
          %v810 = vmul.f32 %v488, %v809
          %v811 = vadd.f32 %v807, %v810
          %s812 = sld [smem:[#allocation11 + $0x16]]
          %v813 = vstv %s812
          %v814 = vmul.f32 %v510, %v813
          %v815 = vadd.f32 %v811, %v814
          %s816 = sld [smem:[#allocation11 + $0x47]]
          %v817 = vstv %s816
          %v818 = vmul.f32 %v529, %v817
          %v819 = vadd.f32 %v815, %v818
          %s820 = sld [smem:[#allocation11 + $0x1d]]
          %v821 = vstv %s820
          %v822 = vmul.f32 %v564, %v821
          %v823 = vadd.f32 %v819, %v822
          %s824 = sld [smem:[#allocation11 + $0x4e]]
          %v825 = vstv %s824
          %v826 = vmul.f32 %v583, %v825
          %v827 = vadd.f32 %v823, %v826
          %s828 = sld [smem:[#allocation11 + $0x24]]
          %v829 = vstv %s828
          %v830 = vmul.f32 %v618, %v829
          %v831 = vadd.f32 %v827, %v830
          %s832 = sld [smem:[#allocation11 + $0x55]]
          %v833 = vstv %s832
          %v834 = vmul.f32 %v637, %v833
          %v835 = vadd.f32 %v831, %v834
          %s836 = sld [smem:[#allocation11 + $0x2b]]
          %v837 = vstv %s836
          %v838 = vmul.f32 %v672, %v837
          %v839 = vadd.f32 %v835, %v838
          %s840 = sld [smem:[#allocation11 + $0x5c]]
          %v841 = vstv %s840
          %v842 = vmul.f32 %v691, %v841
          %v843 = vadd.f32 %v839, %v842
          %v845 = vlaneseq
          %v846 = vshrl.u32 %v845, 7
          %v847 = vsub.s32 0, %v846
          %v848 = vrot.slane %v843, %v847
          %v849 = vlaneseq
          %v850 = vshrl.u32 %v849, 7
          %v851 = vsub.s32 1, %v850
          %v852 = vrot.slane %v843, %v851
          %855 = vrot.lane.b32.xlu0 %v848, 2
          %v856 = vpop.permute.xlu0 %855
          %857 = vrot.lane.b32.xlu0 %v852, 2
          %v858 = vpop.permute.xlu0 %857
          %vm859 = vcmp.lt.s32.totalorder %v333, 2
          %v860 = vsel %vm859, %v856, %v858
          %v861 = vsel %vm859, %v858, %v856
          %s862 = scalar_lea.vmem [#allocation10], 1
          %v863 = vld [vmem:[%s862] ss:$8 sm:$0x3]
          %vm864 = vcmp.ne.s32.totalorder %v863, 0
          %v867 = vcombine.low %v861, %v860
          %v869 = vunpack.c.l.s4 1966171168
          %v870 = vunpack.c.0.s8 %v869
          %v871 = vlaneseq
          %v872 = vshrl.u32 %v871, 7
          %v873 = vsub.s32 %v870, %v872
          %v874 = vrot.slane %v867, %v873
          %v876 = vunpack.c.l.s4 1966171168
          %v877 = vunpack.c.0.s8 %v876
          %v878 = vlaneseq
          %v879 = vshrl.u32 %v878, 7
          %v880 = vsub.s32 %v877, %v879
          %v881 = vrot.slane %v874, %v880
          %v883 = vsel %vm864, %v881, 0.0
          %v884 = vadd.f32 %v787, %v883
          %s885 = sld [smem:[#allocation11 + $0x2]]
          %v886 = vstv %s885
          %v887 = vmul.f32 %v361, %v886
          %v888 = vadd.f32 %v887, 0.0
          %s889 = sld [smem:[#allocation11 + $0x33]]
          %v890 = vstv %s889
          %v891 = vmul.f32 %v380, %v890
          %v892 = vadd.f32 %v888, %v891
          %s893 = sld [smem:[#allocation11 + $0x9]]
          %v894 = vstv %s893
          %v895 = vmul.f32 %v415, %v894
          %v896 = vadd.f32 %v892, %v895
          %s897 = sld [smem:[#allocation11 + $0x3a]]
          %v898 = vstv %s897
          %v899 = vmul.f32 %v434, %v898
          %v900 = vadd.f32 %v896, %v899
          %s901 = sld [smem:[#allocation11 + $0x10]]
          %v902 = vstv %s901
          %v903 = vmul.f32 %v469, %v902
          %v904 = vadd.f32 %v900, %v903
          %s905 = sld [smem:[#allocation11 + $0x41]]
          %v906 = vstv %s905
          %v907 = vmul.f32 %v488, %v906
          %v908 = vadd.f32 %v904, %v907
          %s909 = sld [smem:[#allocation11 + $0x17]]
          %v910 = vstv %s909
          %v911 = vmul.f32 %v510, %v910
          %v912 = vadd.f32 %v908, %v911
          %s913 = sld [smem:[#allocation11 + $0x48]]
          %v914 = vstv %s913
          %v915 = vmul.f32 %v529, %v914
          %v916 = vadd.f32 %v912, %v915
          %s917 = sld [smem:[#allocation11 + $0x1e]]
          %v918 = vstv %s917
          %v919 = vmul.f32 %v564, %v918
          %v920 = vadd.f32 %v916, %v919
          %s921 = sld [smem:[#allocation11 + $0x4f]]
          %v922 = vstv %s921
          %v923 = vmul.f32 %v583, %v922
          %v924 = vadd.f32 %v920, %v923
          %s925 = sld [smem:[#allocation11 + $0x25]]
          %v926 = vstv %s925
          %v927 = vmul.f32 %v618, %v926
          %v928 = vadd.f32 %v924, %v927
          %s929 = sld [smem:[#allocation11 + $0x56]]
          %v930 = vstv %s929
          %v931 = vmul.f32 %v637, %v930
          %v932 = vadd.f32 %v928, %v931
          %s933 = sld [smem:[#allocation11 + $0x2c]]
          %v934 = vstv %s933
          %v935 = vmul.f32 %v672, %v934
          %v936 = vadd.f32 %v932, %v935
          %s937 = sld [smem:[#allocation11 + $0x5d]]
          %v938 = vstv %s937
          %v939 = vmul.f32 %v691, %v938
          %v940 = vadd.f32 %v936, %v939
          %v942 = vlaneseq
          %v943 = vshrl.u32 %v942, 7
          %v944 = vsub.s32 0, %v943
          %v945 = vrot.slane %v940, %v944
          %v946 = vlaneseq
          %v947 = vshrl.u32 %v946, 7
          %v948 = vsub.s32 1, %v947
          %v949 = vrot.slane %v940, %v948
          %952 = vrot.lane.b32.xlu0 %v945, 1
          %v953 = vpop.permute.xlu0 %952
          %954 = vrot.lane.b32.xlu0 %v949, 1
          %v955 = vpop.permute.xlu0 %954
          %vm956 = vcmp.lt.s32.totalorder %v333, 1
          %v957 = vsel %vm956, %v953, %v955
          %v958 = vsel %vm956, %v955, %v953
          %s959 = scalar_lea.vmem [#allocation10], 2
          %v960 = vld [vmem:[%s959] ss:$8 sm:$0x3]
          %vm961 = vcmp.ne.s32.totalorder %v960, 0
          %v964 = vcombine.low %v958, %v957
          %v966 = vunpack.c.l.s4 1966171168
          %v967 = vunpack.c.0.s8 %v966
          %v968 = vlaneseq
          %v969 = vshrl.u32 %v968, 7
          %v970 = vsub.s32 %v967, %v969
          %v971 = vrot.slane %v964, %v970
          %v973 = vunpack.c.l.s4 1966171168
          %v974 = vunpack.c.0.s8 %v973
          %v975 = vlaneseq
          %v976 = vshrl.u32 %v975, 7
          %v977 = vsub.s32 %v974, %v976
          %v978 = vrot.slane %v971, %v977
          %v980 = vsel %vm961, %v978, 0.0
          %v981 = vadd.f32 %v884, %v980
          %s982 = sld [smem:[#allocation11 + $0x3]]
          %v983 = vstv %s982
          %v984 = vmul.f32 %v361, %v983
          %v985 = vadd.f32 %v984, 0.0
          %s986 = sld [smem:[#allocation11 + $0x34]]
          %v987 = vstv %s986
          %v988 = vmul.f32 %v380, %v987
          %v989 = vadd.f32 %v985, %v988
          %s990 = sld [smem:[#allocation11 + $0xa]]
          %v991 = vstv %s990
          %v992 = vmul.f32 %v415, %v991
          %v993 = vadd.f32 %v989, %v992
          %s994 = sld [smem:[#allocation11 + $0x3b]]
          %v995 = vstv %s994
          %v996 = vmul.f32 %v434, %v995
          %v997 = vadd.f32 %v993, %v996
          %s998 = sld [smem:[#allocation11 + $0x11]]
          %v999 = vstv %s998
          %v1000 = vmul.f32 %v469, %v999
          %v1001 = vadd.f32 %v997, %v1000
          %s1002 = sld [smem:[#allocation11 + $0x42]]
          %v1003 = vstv %s1002
          %v1004 = vmul.f32 %v488, %v1003
          %v1005 = vadd.f32 %v1001, %v1004
          %s1006 = sld [smem:[#allocation11 + $0x18]]
          %v1007 = vstv %s1006
          %v1008 = vmul.f32 %v510, %v1007
          %v1009 = vadd.f32 %v1005, %v1008
          %s1010 = sld [smem:[#allocation11 + $0x49]]
          %v1011 = vstv %s1010
          %v1012 = vmul.f32 %v529, %v1011
          %v1013 = vadd.f32 %v1009, %v1012
          %s1014 = sld [smem:[#allocation11 + $0x1f]]
          %v1015 = vstv %s1014
          %v1016 = vmul.f32 %v564, %v1015
          %v1017 = vadd.f32 %v1013, %v1016
          %s1018 = sld [smem:[#allocation11 + $0x50]]
          %v1019 = vstv %s1018
          %v1020 = vmul.f32 %v583, %v1019
          %v1021 = vadd.f32 %v1017, %v1020
          %s1022 = sld [smem:[#allocation11 + $0x26]]
          %v1023 = vstv %s1022
          %v1024 = vmul.f32 %v618, %v1023
          %v1025 = vadd.f32 %v1021, %v1024
          %s1026 = sld [smem:[#allocation11 + $0x57]]
          %v1027 = vstv %s1026
          %v1028 = vmul.f32 %v637, %v1027
          %v1029 = vadd.f32 %v1025, %v1028
          %s1030 = sld [smem:[#allocation11 + $0x2d]]
          %v1031 = vstv %s1030
          %v1032 = vmul.f32 %v672, %v1031
          %v1033 = vadd.f32 %v1029, %v1032
          %s1034 = sld [smem:[#allocation11 + $0x5e]]
          %v1035 = vstv %s1034
          %v1036 = vmul.f32 %v691, %v1035
          %v1037 = vadd.f32 %v1033, %v1036
          %s1038 = scalar_lea.vmem [#allocation10], 3
          %v1039 = vld [vmem:[%s1038] ss:$8 sm:$0x3]
          %vm1040 = vcmp.ne.s32.totalorder %v1039, 0
          %v1041 = vsel %vm1040, %v1037, 0.0
          %v1042 = vadd.f32 %v981, %v1041
          %s1043 = sld [smem:[#allocation11 + $0x4]]
          %v1044 = vstv %s1043
          %v1045 = vmul.f32 %v361, %v1044
          %v1046 = vadd.f32 %v1045, 0.0
          %s1047 = sld [smem:[#allocation11 + $0x35]]
          %v1048 = vstv %s1047
          %v1049 = vmul.f32 %v380, %v1048
          %v1050 = vadd.f32 %v1046, %v1049
          %s1051 = sld [smem:[#allocation11 + $0xb]]
          %v1052 = vstv %s1051
          %v1053 = vmul.f32 %v415, %v1052
          %v1054 = vadd.f32 %v1050, %v1053
          %s1055 = sld [smem:[#allocation11 + $0x3c]]
          %v1056 = vstv %s1055
          %v1057 = vmul.f32 %v434, %v1056
          %v1058 = vadd.f32 %v1054, %v1057
          %s1059 = sld [smem:[#allocation11 + $0x12]]
          %v1060 = vstv %s1059
          %v1061 = vmul.f32 %v469, %v1060
          %v1062 = vadd.f32 %v1058, %v1061
          %s1063 = sld [smem:[#allocation11 + $0x43]]
          %v1064 = vstv %s1063
          %v1065 = vmul.f32 %v488, %v1064
          %v1066 = vadd.f32 %v1062, %v1065
          %s1067 = sld [smem:[#allocation11 + $0x19]]
          %v1068 = vstv %s1067
          %v1069 = vmul.f32 %v510, %v1068
          %v1070 = vadd.f32 %v1066, %v1069
          %s1071 = sld [smem:[#allocation11 + $0x4a]]
          %v1072 = vstv %s1071
          %v1073 = vmul.f32 %v529, %v1072
          %v1074 = vadd.f32 %v1070, %v1073
          %s1075 = sld [smem:[#allocation11 + $0x20]]
          %v1076 = vstv %s1075
          %v1077 = vmul.f32 %v564, %v1076
          %v1078 = vadd.f32 %v1074, %v1077
          %s1079 = sld [smem:[#allocation11 + $0x51]]
          %v1080 = vstv %s1079
          %v1081 = vmul.f32 %v583, %v1080
          %v1082 = vadd.f32 %v1078, %v1081
          %s1083 = sld [smem:[#allocation11 + $0x27]]
          %v1084 = vstv %s1083
          %v1085 = vmul.f32 %v618, %v1084
          %v1086 = vadd.f32 %v1082, %v1085
          %s1087 = sld [smem:[#allocation11 + $0x58]]
          %v1088 = vstv %s1087
          %v1089 = vmul.f32 %v637, %v1088
          %v1090 = vadd.f32 %v1086, %v1089
          %s1091 = sld [smem:[#allocation11 + $0x2e]]
          %v1092 = vstv %s1091
          %v1093 = vmul.f32 %v672, %v1092
          %v1094 = vadd.f32 %v1090, %v1093
          %s1095 = sld [smem:[#allocation11 + $0x5f]]
          %v1096 = vstv %s1095
          %v1097 = vmul.f32 %v691, %v1096
          %v1098 = vadd.f32 %v1094, %v1097
          %v1100 = vlaneseq
          %v1101 = vshrl.u32 %v1100, 7
          %v1102 = vsub.s32 0, %v1101
          %v1103 = vrot.slane %v1098, %v1102
          %v1104 = vlaneseq
          %v1105 = vshrl.u32 %v1104, 7
          %v1106 = vsub.s32 1, %v1105
          %v1107 = vrot.slane %v1098, %v1106
          %1110 = vrot.lane.b32.xlu0 %v1103, 127
          %v1111 = vpop.permute.xlu0 %1110
          %1112 = vrot.lane.b32.xlu0 %v1107, 127
          %v1113 = vpop.permute.xlu0 %1112
          %vm1114 = vcmp.lt.s32.totalorder %v333, 127
          %v1115 = vsel %vm1114, %v1111, %v1113
          %v1116 = vsel %vm1114, %v1113, %v1111
          %s1117 = scalar_lea.vmem [#allocation10], 4
          %v1118 = vld [vmem:[%s1117] ss:$8 sm:$0x3]
          %vm1119 = vcmp.ne.s32.totalorder %v1118, 0
          %v1122 = vcombine.low %v1115, %v1116
          %v1124 = vunpack.c.l.s4 1966171168
          %v1125 = vunpack.c.0.s8 %v1124
          %v1126 = vlaneseq
          %v1127 = vshrl.u32 %v1126, 7
          %v1128 = vsub.s32 %v1125, %v1127
          %v1129 = vrot.slane %v1122, %v1128
          %v1131 = vunpack.c.l.s4 1966171168
          %v1132 = vunpack.c.0.s8 %v1131
          %v1133 = vlaneseq
          %v1134 = vshrl.u32 %v1133, 7
          %v1135 = vsub.s32 %v1132, %v1134
          %v1136 = vrot.slane %v1129, %v1135
          %v1138 = vsel %vm1119, %v1136, 0.0
          %v1139 = vadd.f32 %v1042, %v1138
          %s1140 = sld [smem:[#allocation11 + $0x5]]
          %v1141 = vstv %s1140
          %v1142 = vmul.f32 %v361, %v1141
          %v1143 = vadd.f32 %v1142, 0.0
          %s1144 = sld [smem:[#allocation11 + $0x36]]
          %v1145 = vstv %s1144
          %v1146 = vmul.f32 %v380, %v1145
          %v1147 = vadd.f32 %v1143, %v1146
          %s1148 = sld [smem:[#allocation11 + $0xc]]
          %v1149 = vstv %s1148
          %v1150 = vmul.f32 %v415, %v1149
          %v1151 = vadd.f32 %v1147, %v1150
          %s1152 = sld [smem:[#allocation11 + $0x3d]]
          %v1153 = vstv %s1152
          %v1154 = vmul.f32 %v434, %v1153
          %v1155 = vadd.f32 %v1151, %v1154
          %s1156 = sld [smem:[#allocation11 + $0x13]]
          %v1157 = vstv %s1156
          %v1158 = vmul.f32 %v469, %v1157
          %v1159 = vadd.f32 %v1155, %v1158
          %s1160 = sld [smem:[#allocation11 + $0x44]]
          %v1161 = vstv %s1160
          %v1162 = vmul.f32 %v488, %v1161
          %v1163 = vadd.f32 %v1159, %v1162
          %s1164 = sld [smem:[#allocation11 + $0x1a]]
          %v1165 = vstv %s1164
          %v1166 = vmul.f32 %v510, %v1165
          %v1167 = vadd.f32 %v1163, %v1166
          %s1168 = sld [smem:[#allocation11 + $0x4b]]
          %v1169 = vstv %s1168
          %v1170 = vmul.f32 %v529, %v1169
          %v1171 = vadd.f32 %v1167, %v1170
          %s1172 = sld [smem:[#allocation11 + $0x21]]
          %v1173 = vstv %s1172
          %v1174 = vmul.f32 %v564, %v1173
          %v1175 = vadd.f32 %v1171, %v1174
          %s1176 = sld [smem:[#allocation11 + $0x52]]
          %v1177 = vstv %s1176
          %v1178 = vmul.f32 %v583, %v1177
          %v1179 = vadd.f32 %v1175, %v1178
          %s1180 = sld [smem:[#allocation11 + $0x28]]
          %v1181 = vstv %s1180
          %v1182 = vmul.f32 %v618, %v1181
          %v1183 = vadd.f32 %v1179, %v1182
          %s1184 = sld [smem:[#allocation11 + $0x59]]
          %v1185 = vstv %s1184
          %v1186 = vmul.f32 %v637, %v1185
          %v1187 = vadd.f32 %v1183, %v1186
          %s1188 = sld [smem:[#allocation11 + $0x2f]]
          %v1189 = vstv %s1188
          %v1190 = vmul.f32 %v672, %v1189
          %v1191 = vadd.f32 %v1187, %v1190
          %s1192 = sld [smem:[#allocation11 + $0x60]]
          %v1193 = vstv %s1192
          %v1194 = vmul.f32 %v691, %v1193
          %v1195 = vadd.f32 %v1191, %v1194
          %v1197 = vlaneseq
          %v1198 = vshrl.u32 %v1197, 7
          %v1199 = vsub.s32 0, %v1198
          %v1200 = vrot.slane %v1195, %v1199
          %v1201 = vlaneseq
          %v1202 = vshrl.u32 %v1201, 7
          %v1203 = vsub.s32 1, %v1202
          %v1204 = vrot.slane %v1195, %v1203
          %1207 = vrot.lane.b32.xlu0 %v1200, 126
          %v1208 = vpop.permute.xlu0 %1207
          %1209 = vrot.lane.b32.xlu0 %v1204, 126
          %v1210 = vpop.permute.xlu0 %1209
          %vm1211 = vcmp.lt.s32.totalorder %v333, 126
          %v1212 = vsel %vm1211, %v1208, %v1210
          %v1213 = vsel %vm1211, %v1210, %v1208
          %s1214 = scalar_lea.vmem [#allocation10], 5
          %v1215 = vld [vmem:[%s1214] ss:$8 sm:$0x3]
          %vm1216 = vcmp.ne.s32.totalorder %v1215, 0
          %v1219 = vcombine.low %v1212, %v1213
          %v1221 = vunpack.c.l.s4 1966171168
          %v1222 = vunpack.c.0.s8 %v1221
          %v1223 = vlaneseq
          %v1224 = vshrl.u32 %v1223, 7
          %v1225 = vsub.s32 %v1222, %v1224
          %v1226 = vrot.slane %v1219, %v1225
          %v1228 = vunpack.c.l.s4 1966171168
          %v1229 = vunpack.c.0.s8 %v1228
          %v1230 = vlaneseq
          %v1231 = vshrl.u32 %v1230, 7
          %v1232 = vsub.s32 %v1229, %v1231
          %v1233 = vrot.slane %v1226, %v1232
          %v1235 = vsel %vm1216, %v1233, 0.0
          %v1236 = vadd.f32 %v1139, %v1235
          %s1237 = sld [smem:[#allocation11 + $0x6]]
          %v1238 = vstv %s1237
          %v1239 = vmul.f32 %v361, %v1238
          %v1240 = vadd.f32 %v1239, 0.0
          %s1241 = sld [smem:[#allocation11 + $0x37]]
          %v1242 = vstv %s1241
          %v1243 = vmul.f32 %v380, %v1242
          %v1244 = vadd.f32 %v1240, %v1243
          %s1245 = sld [smem:[#allocation11 + $0xd]]
          %v1246 = vstv %s1245
          %v1247 = vmul.f32 %v415, %v1246
          %v1248 = vadd.f32 %v1244, %v1247
          %s1249 = sld [smem:[#allocation11 + $0x3e]]
          %v1250 = vstv %s1249
          %v1251 = vmul.f32 %v434, %v1250
          %v1252 = vadd.f32 %v1248, %v1251
          %s1253 = sld [smem:[#allocation11 + $0x14]]
          %v1254 = vstv %s1253
          %v1255 = vmul.f32 %v469, %v1254
          %v1256 = vadd.f32 %v1252, %v1255
          %s1257 = sld [smem:[#allocation11 + $0x45]]
          %v1258 = vstv %s1257
          %v1259 = vmul.f32 %v488, %v1258
          %v1260 = vadd.f32 %v1256, %v1259
          %s1261 = sld [smem:[#allocation11 + $0x1b]]
          %v1262 = vstv %s1261
          %v1263 = vmul.f32 %v510, %v1262
          %v1264 = vadd.f32 %v1260, %v1263
          %s1265 = sld [smem:[#allocation11 + $0x4c]]
          %v1266 = vstv %s1265
          %v1267 = vmul.f32 %v529, %v1266
          %v1268 = vadd.f32 %v1264, %v1267
          %s1269 = sld [smem:[#allocation11 + $0x22]]
          %v1270 = vstv %s1269
          %v1271 = vmul.f32 %v564, %v1270
          %v1272 = vadd.f32 %v1268, %v1271
          %s1273 = sld [smem:[#allocation11 + $0x53]]
          %v1274 = vstv %s1273
          %v1275 = vmul.f32 %v583, %v1274
          %v1276 = vadd.f32 %v1272, %v1275
          %s1277 = sld [smem:[#allocation11 + $0x29]]
          %v1278 = vstv %s1277
          %v1279 = vmul.f32 %v618, %v1278
          %v1280 = vadd.f32 %v1276, %v1279
          %s1281 = sld [smem:[#allocation11 + $0x5a]]
          %v1282 = vstv %s1281
          %v1283 = vmul.f32 %v637, %v1282
          %v1284 = vadd.f32 %v1280, %v1283
          %s1285 = sld [smem:[#allocation11 + $0x30]]
          %v1286 = vstv %s1285
          %v1287 = vmul.f32 %v672, %v1286
          %v1288 = vadd.f32 %v1284, %v1287
          %s1289 = sld [smem:[#allocation11 + $0x61]]
          %v1290 = vstv %s1289
          %v1291 = vmul.f32 %v691, %v1290
          %v1292 = vadd.f32 %v1288, %v1291
          %v1294 = vlaneseq
          %v1295 = vshrl.u32 %v1294, 7
          %v1296 = vsub.s32 0, %v1295
          %v1297 = vrot.slane %v1292, %v1296
          %v1298 = vlaneseq
          %v1299 = vshrl.u32 %v1298, 7
          %v1300 = vsub.s32 1, %v1299
          %v1301 = vrot.slane %v1292, %v1300
          %1304 = vrot.lane.b32.xlu0 %v1297, 125
          %v1305 = vpop.permute.xlu0 %1304
          %1306 = vrot.lane.b32.xlu0 %v1301, 125
          %v1307 = vpop.permute.xlu0 %1306
          %vm1308 = vcmp.lt.s32.totalorder %v333, 125
          %v1309 = vsel %vm1308, %v1305, %v1307
          %v1310 = vsel %vm1308, %v1307, %v1305
          %s1311 = scalar_lea.vmem [#allocation10], 6
          %v1312 = vld [vmem:[%s1311] ss:$8 sm:$0x3]
          %vm1313 = vcmp.ne.s32.totalorder %v1312, 0
          %v1316 = vcombine.low %v1309, %v1310
          %v1318 = vunpack.c.l.s4 1966171168
          %v1319 = vunpack.c.0.s8 %v1318
          %v1320 = vlaneseq
          %v1321 = vshrl.u32 %v1320, 7
          %v1322 = vsub.s32 %v1319, %v1321
          %v1323 = vrot.slane %v1316, %v1322
          %v1325 = vunpack.c.l.s4 1966171168
          %v1326 = vunpack.c.0.s8 %v1325
          %v1327 = vlaneseq
          %v1328 = vshrl.u32 %v1327, 7
          %v1329 = vsub.s32 %v1326, %v1328
          %v1330 = vrot.slane %v1323, %v1329
          %v1332 = vsel %vm1313, %v1330, 0.0
          %v1333 = vadd.f32 %v1236, %v1332
          %v1334 = vxor.u32 %v1333, 2147483648
          %v1335 = vmul.f32 %v1334, 1.442695
          %v1336 = vpow.pop %v1335
          %v1337 = vadd.f32 %v1336, 1.0
          %v1338 = vrcp.pop %v1337
          %v1339 = vmul.f32 1.0, %v1338
          %v1340 = vlaneseq
          %vm1341 = vcmp.ge.s32.totalorder %v1340, 0
          %vm1342 = vcmp.lt.s32.totalorder %v1340, 256
          %vm1343 = vmand %vm1341, %vm1342
          %1344 = vst.msk [vmem:[%s268] sm:$0x3] %vm1343, %v1339
        $region60: #{tpu_custom_call.1} parent=35 // pred_fallthru
          _
        %s1345 = sand.u32 %s134, 1
        %s1346 = scalar_lea.sflag [#allocation6], %s1345
        %s1347 = sand.u32 %s134, 1
        %s1348 = smul.addr %s1347, 2
        %s1349 = scalar_lea.vmem [#allocation12], %s1348
        // Predicated region
        $region61: #{tpu_custom_call.1} parent=35 // pred_check
          %p1350 = pneg %p144
        $region62: #{tpu_custom_call.1} parent=35 // pred_check_branch
          %1352 = sbr.rel (%p1350) target = $region64
        $region63: #{tpu_custom_call.1} parent=35 // pred_region
          %s1354 = ssub.s32 32, 32
          %1355 = vsyncadd %s1346, %s1354
          %s1356 = smul.addr %s27, 2
          %s1357 = smul.addr %s1356, 16
          %s1358 = scalar_lea.hbm %s4, %s1357
          %s1360 = sshll.u32 %s1349, 4
          %s1361 = int_to_ptr.vmem [resolvable:$true] %s1360
          %1363 = dma.vmem_to_hbm [thread:$0]  %s1361, 32, %s1358, %s1346
        $region64: #{tpu_custom_call.1} parent=35 // pred_fallthru
          _
      $region36: #{tpu_custom_call.1} parent=5 // pred_fallthru
        _
      %p1364 = scmp.le.s32.totalorder 2, %s18
      // Predicated region
      $region65: #{tpu_custom_call.1} parent=5 // pred_check
        %p1365 = pneg %p1364
      $region66: #{tpu_custom_call.1} parent=5 // pred_check_branch
        %1367 = sbr.rel (%p1365) target = $region68
      $region67: #{tpu_custom_call.1} parent=5 // pred_region
        %s1368 = ssub.s32 %s18, 2
        // Predicated region
        $region69: #{tpu_custom_call.1} parent=67 // pred_check
          %p1369 = pneg %p150
        $region70: #{tpu_custom_call.1} parent=67 // pred_check_branch
          %1371 = sbr.rel (%p1369) target = $region72
        $region71: #{tpu_custom_call.1} parent=67 // pred_region
          %s1372 = sand.u32 %s135, 1
          %s1373 = scalar_lea.sflag [#allocation6], %s1372
          %s1374 = sand.u32 %s135, 1
          %s1375 = smul.addr %s1374, 2
          %s1376 = scalar_lea.vmem [#allocation12], %s1375
          %1377 = dma.done %s1373, 32
        $region72: #{tpu_custom_call.1} parent=67 // pred_fallthru
          _
      $region68: #{tpu_custom_call.1} parent=5 // pred_fallthru
        _
    $region6: #{tpu_custom_call.1} parent=1 // loop_footer
      %s22 = sadd.s32 1, %s18
    $region7: #{tpu_custom_call.1} parent=1 // loop_footer_branch
      %17 = sbr.rel target = $region3
    $region8: #{tpu_custom_call.1} parent=1 // loop_exit
      _
    %1378 = vsyncpa [#allocation5], 1
    %s1379 = scalar_lea.sflag [#allocation5], 1
    %1380 = vsyncpa %s1379, 1
    %1381 = vsyncpa [#allocation9], 1
    %1382 = vsyncpa [#allocation6], 1
    %s1383 = scalar_lea.sflag [#allocation6], 1
    %1384 = vsyncpa %s1383, 1
    %1385 = vsyncpa [#allocation7], 1
    %s1386 = scalar_lea.sflag [#allocation7], 1
    %1387 = vsyncpa %s1386, 1

</llo_original>
